<compile_context>
chip_gen: v6e
topology: v6e:2x2x1
jax: 0.10.0
libtpu: 0.0.40
codegen_flags: <defaults>
</compile_context>

<pallas_src>
import jax
import jax.numpy as jnp
from jax.experimental import pallas as pl
from jax.experimental.pallas import tpu as pltpu

EPS = 1e-5


# ----------------------------------------------------------------------------
# Pallas kernel: one batch tile per grid step, per-tap accumulated MXU dots.
# ----------------------------------------------------------------------------
def inception_kernel(x_ref,            # (B, cin, L)        input tile (native NCL)
                     w1_ref,           # (3, co, cin)        stage-1 per-tap weights
                     sh1_ref,          # (co, 1)             stage-1 fused shift
                     w2_ref,           # (5, 2*c4, 2*c4)     stage-2 per-offset weights
                     sh2_ref,          # (2*c4, 1)           stage-2 fused shift
                     out_ref):         # (B, co, L)
    B, cin, L = x_ref.shape
    co = out_ref.shape[1]
    c4 = co // 4
    c2 = 2 * c4

    for b in range(B):                 # static unroll over the batch tile
        xb = x_ref[b]                                          # (cin, L)
        # 1-lane halo for the stage-1 k=3 (pad=1) convs, zero-filled in regs.
        z1 = jnp.zeros((cin, 1), dtype=xb.dtype)
        xp = jnp.concatenate([z1, xb, z1], axis=-1)            # (cin, L + 2)

        # ---- stage 1: per-tap accumulated matmuls in (co, L) orientation.
        # Rows of w1_ref[k]: [br1 | branch2.conv1 | branch3.conv1 | br4];
        # conv bias + BN scales are already folded into w1/sh1.
        acc1 = jnp.dot(w1_ref[0], xp[:, 0:L],
                       preferred_element_type=jnp.float32)
        acc1 += jnp.dot(w1_ref[1], xp[:, 1:1 + L],
                        preferred_element_type=jnp.float32)
        acc1 += jnp.dot(w1_ref[2], xp[:, 2:2 + L],
                        preferred_element_type=jnp.float32)
        s1 = jnp.maximum(acc1 + sh1_ref[...], 0.0)             # (co, L) f32

        # branch1 / branch4 rows already carry the final BN+ReLU -> store
        # (lane-dense slice stores, no channel concatenation).
        out_ref[b, :c4, :] = s1[:c4, :].astype(out_ref.dtype)
        out_ref[b, 3 * c4:, :] = s1[3 * c4:, :].astype(out_ref.dtype)

        # ---- stage 2: k=3 (branch2) / k=5 (branch3) convs on the
        # intermediate activations, block-diagonal per-offset weights with the
        # final BN already folded.  2-lane halo zero-filled in registers.
        t23 = s1[c4:3 * c4, :].astype(w2_ref.dtype)            # (2*c4, L)
        z2 = jnp.zeros((c2, 2), dtype=t23.dtype)
        tp = jnp.concatenate([z2, t23, z2], axis=-1)           # (2*c4, L + 4)

        acc2 = jnp.dot(w2_ref[0], tp[:, 0:L],
                       preferred_element_type=jnp.float32)
        for d in range(1, 5):
            acc2 += jnp.dot(w2_ref[d], tp[:, d:d + L],
                            preferred_element_type=jnp.float32)
        s2 = jnp.maximum(acc2 + sh2_ref[...], 0.0)             # (2*c4, L)
        out_ref[b, c4:3 * c4, :] = s2.astype(out_ref.dtype)


# ----------------------------------------------------------------------------
# Weight fusion (wrapper side, runs once under jit).
# ----------------------------------------------------------------------------
def _fuse_params(p, cin, co, compute_dtype):
    c4 = co // 4
    f32 = jnp.float32

    # Per-channel scale/shift applied right after stage 1, rows ordered as
    # [br1 | t2 | t3 | br4]: final BN for br1/br4, branch BN for t2/t3.
    scale1 = jnp.concatenate([p['out_scale'][:c4], p['bn2_scale'],
                              p['bn3_scale'], p['out_scale'][3 * c4:]])
    shift1 = jnp.concatenate([p['out_shift'][:c4], p['bn2_shift'],
                              p['bn3_shift'], p['out_shift'][3 * c4:]])
    bias1 = jnp.concatenate([p['b1'], p['b2a'], p['b3a'], p['b4']])

    # Stage-1 per-tap weights in (out_ch, in_ch) orientation; tap k matches
    # the window x_pad1[:, k:k+L].  1x1 convs contribute only at the center.
    zin = jnp.zeros((c4, cin), f32)
    w1 = []
    for k in range(3):
        w1.append(jnp.concatenate(
            [p['w1'][:, :, 0] if k == 1 else zin,
             p['w2a'][:, :, 0] if k == 1 else zin,
             p['w3a'][:, :, k],
             p['w4'][:, :, k]], axis=0))                       # (co, cin)
    w1_taps = jnp.stack(w1, axis=0).astype(f32)                # (3, co, cin)
    # Fold BN scale into weight rows, conv bias + BN shift into one shift.
    w1_taps = w1_taps * scale1[None, :, None]
    sh1 = (bias1 * scale1 + shift1)[:, None]                   # (co, 1)

    # Stage-2 per-offset weights, block-diagonal over [branch2 | branch3];
    # offset d matches the window t23_pad2[:, d:d+L].  branch2 (k=3, pad=1)
    # only covers offsets 1..3.  Final BN (middle channels) folded in.
    # TODO(synk): at production widths (c4 >= 128) split into two per-branch
    # matmuls to skip the structurally-zero off-diagonal blocks.
    s_mid = p['out_scale'][c4:3 * c4]
    h_mid = p['out_shift'][c4:3 * c4]
    zc = jnp.zeros((c4, c4), f32)
    w2 = []
    for d in range(5):
        top = jnp.concatenate(
            [p['w2b'][:, :, d - 1] if 1 <= d <= 3 else zc, zc], axis=1)
        bot = jnp.concatenate([zc, p['w3b'][:, :, d]], axis=1)
        w2.append(jnp.concatenate([top, bot], axis=0))         # (2*c4, 2*c4)
    w2_taps = jnp.stack(w2, axis=0).astype(f32) * s_mid[None, :, None]
    sh2 = (jnp.concatenate([p['b2b'], p['b3b']]) * s_mid + h_mid)[:, None]

    return (w1_taps.astype(compute_dtype), sh1.astype(f32),
            w2_taps.astype(compute_dtype), sh2.astype(f32))


# ----------------------------------------------------------------------------
# Wrapper: fused weights + pallas_call over batch tiles.  No transposes, no
# HBM-side padding -- the input stays in its native (N, cin, L) layout.
# ----------------------------------------------------------------------------
def inception_forward_pallas(x_ncl, p, compute_dtype=jnp.float32,
                             batch_tile=None, out_dtype=jnp.float32):
    N, cin, L = x_ncl.shape
    co = p['out_scale'].shape[0]
    assert co % 4 == 0
    c4 = co // 4

    # Default batch tile: amortize per-grid-step overhead while keeping the
    # grid length >= 2 so the "parallel" axis still shards across both
    # TensorCores on v7x.  (On v7x also keep per-step VMEM modest:
    # 2 buffers * batch_tile * (cin + co) * L * itemsize + resident weights.)
    if batch_tile is None:
        batch_tile = 1
        for bt in (8, 4, 2):
            if N % bt == 0 and N // bt >= 2:
                batch_tile = bt
                break
    assert N % batch_tile == 0

    w1_taps, sh1, w2_taps, sh2 = _fuse_params(p, cin, co, compute_dtype)
    x = x_ncl.astype(compute_dtype)    # no-op in f32; single cast for bf16

    def const_spec(shape):
        # Weights/shifts: constant index_map -> resident across the grid.
        # TODO(synk): pipeline_mode=pl.Buffered(1) would halve their VMEM
        # footprint (matters on v7x when batch_tile is pushed to the limit).
        return pl.BlockSpec(shape, lambda n, _s=len(shape): (0,) * _s)

    itemsize = jnp.dtype(compute_dtype).itemsize
    flops = 2 * N * L * (3 * co * cin + 5 * (2 * c4) ** 2) + 6 * N * L * co
    bytes_accessed = (x.size * itemsize
                      + N * co * L * jnp.dtype(out_dtype).itemsize
                      + (w1_taps.size + w2_taps.size) * itemsize
                      + (sh1.size + sh2.size) * 4)

    return pl.pallas_call(
        inception_kernel,
        out_shape=jax.ShapeDtypeStruct((N, co, L), out_dtype),
        grid=(N // batch_tile,),
        in_specs=[
            pl.BlockSpec((batch_tile, cin, L), lambda n: (n, 0, 0)),
            const_spec((3, co, cin)),
            const_spec((co, 1)),
            const_spec((5, 2 * c4, 2 * c4)),
            const_spec((2 * c4, 1)),
        ],
        out_specs=pl.BlockSpec((batch_tile, co, L), lambda n: (n, 0, 0)),
        compiler_params=pltpu.CompilerParams(
            dimension_semantics=("parallel",)),
        cost_estimate=pl.CostEstimate(flops=flops, transcendentals=0,
                                      bytes_accessed=bytes_accessed),
    )(x, w1_taps, sh1, w2_taps, sh2)


# ----------------------------------------------------------------------------
# Deterministic parameter initialization (shapes from Inception.__init__).
# ----------------------------------------------------------------------------
def init_params(key, cin, co):
    assert co % 4 == 0
    c4 = co // 4
    ks = list(jax.random.split(key, 32))

    def nrm(shape, scale=0.2):
        return scale * jax.random.normal(ks.pop(), shape, dtype=jnp.float32)

    def bn_fold(n):
        gamma = 1.0 + 0.1 * jax.random.normal(ks.pop(), (n,), dtype=jnp.float32)
        beta = 0.1 * jax.random.normal(ks.pop(), (n,), dtype=jnp.float32)
        mean = 0.1 * jax.random.normal(ks.pop(), (n,), dtype=jnp.float32)
        var = jax.random.uniform(ks.pop(), (n,), jnp.float32, 0.5, 1.5)
        scale = gamma / jnp.sqrt(var + EPS)
        shift = beta - mean * scale
        return scale, shift

    p = {}
    p['w1'], p['b1'] = nrm((c4, cin, 1)), nrm((c4,))
    p['w2a'], p['b2a'] = nrm((c4, cin, 1)), nrm((c4,))
    p['w2b'], p['b2b'] = nrm((c4, c4, 3)), nrm((c4,))
    p['w3a'], p['b3a'] = nrm((c4, cin, 3)), nrm((c4,))
    p['w3b'], p['b3b'] = nrm((c4, c4, 5)), nrm((c4,))
    p['w4'], p['b4'] = nrm((c4, cin, 3)), nrm((c4,))
    p['bn2_scale'], p['bn2_shift'] = bn_fold(c4)
    p['bn3_scale'], p['bn3_shift'] = bn_fold(c4)
    p['out_scale'], p['out_shift'] = bn_fold(co)
    return p


# ----------------------------------------------------------------------------
# Pure-JAX reference (mirrors the PyTorch forward; BN in inference mode).
# ----------------------------------------------------------------------------
def inception_forward_ref(x, p):
    def conv(t, w, b, pad):
        y = jax.lax.conv_general_dilated(
            t, w, (1,), [(pad, pad)],
            dimension_numbers=('NCH', 'OIH', 'NCH'),
            precision=jax.lax.Precision.HIGHEST)
        return y + b[None, :, None]

    bn = lambda t, s, h: t * s[None, :, None] + h[None, :, None]
    relu = lambda t: jnp.maximum(t, 0.0)

    b1 = conv(x, p['w1'], p['b1'], 0)
    t2 = relu(bn(conv(x, p['w2a'], p['b2a'], 0), p['bn2_scale'], p['bn2_shift']))
    b2 = conv(t2, p['w2b'], p['b2b'], 1)
    t3 = relu(bn(conv(x, p['w3a'], p['b3a'], 1), p['bn3_scale'], p['bn3_shift']))
    b3 = conv(t3, p['w3b'], p['b3b'], 2)
    b4 = conv(x, p['w4'], p['b4'], 1)
    cat = jnp.concatenate([b1, b2, b3, b4], axis=1)
    return relu(bn(cat, p['out_scale'], p['out_shift']))


if __name__ == "__main__":
    N, CIN, L, CO = 4, 8, 16, 16      # small shapes; co % 4 == 0

    key = jax.random.PRNGKey(0)
    k_x, k_p = jax.random.split(key)
    x = jax.random.normal(k_x, (N, CIN, L), dtype=jnp.float32)   # PyTorch (N, C, L)
    params = init_params(k_p, CIN, CO)

    ref = inception_forward_ref(x, params)

    # f32 path: correctness check against the pure-JAX reference.
    out = jax.block_until_ready(jax.jit(inception_forward_pallas)(x, params))
    assert out.shape == (N, CO, L), out.shape
    assert jnp.allclose(out, ref, atol=1e-2, rtol=1e-2), \
        float(jnp.max(jnp.abs(out - ref)))

    # bf16 operand path (v6e/v7x fast path): f32 accumulation, loose tolerance.
    out_bf = jax.block_until_ready(
        jax.jit(lambda xx, pp: inception_forward_pallas(
            xx, pp, compute_dtype=jnp.bfloat16))(x, params))
    assert bool(jnp.all(jnp.isfinite(out_bf)))
    assert jnp.allclose(out_bf, ref, atol=0.15, rtol=0.15), \
        float(jnp.max(jnp.abs(out_bf - ref)))

    print("KERNEL_OK")
</pallas_src>

<mosaic_0001>
module attributes {stable_mosaic.version = 11 : i64} {
  func.func @inception_kernel(%arg0: i32, %arg1: memref<2x8x16xf32, #tpu.memory_space<vmem>>, %arg2: memref<3x16x8xf32, #tpu.memory_space<vmem>>, %arg3: memref<16x1xf32, #tpu.memory_space<vmem>>, %arg4: memref<5x8x8xf32, #tpu.memory_space<vmem>>, %arg5: memref<8x1xf32, #tpu.memory_space<vmem>>, %arg6: memref<2x16x16xf32, #tpu.memory_space<vmem>>) attributes {dimension_semantics = [#tpu.dimension_semantics<parallel>], iteration_bounds = array<i64: 2>, scalar_prefetch = 0 : i64, scratch_operands = 0 : i64, tpu.core_type = #tpu.core_type<tc>, window_params = [{transform_indices = @transform_0, window_bounds = array<i64: 2, 8, 16>}, {pipeline_mode = #tpu.pipeline_mode<synchronous>, transform_indices = @transform_1, window_bounds = array<i64: 3, 16, 8>}, {pipeline_mode = #tpu.pipeline_mode<synchronous>, transform_indices = @transform_2, window_bounds = array<i64: 16, 1>}, {pipeline_mode = #tpu.pipeline_mode<synchronous>, transform_indices = @transform_3, window_bounds = array<i64: 5, 8, 8>}, {pipeline_mode = #tpu.pipeline_mode<synchronous>, transform_indices = @transform_4, window_bounds = array<i64: 8, 1>}, {transform_indices = @transform_5, window_bounds = array<i64: 2, 16, 16>}]} {
    %c0 = arith.constant 0 : index
    %c0_0 = arith.constant 0 : index
    %c0_1 = arith.constant 0 : index
    %0 = vector.load %arg1[%c0, %c0_0, %c0_1] : memref<2x8x16xf32, #tpu.memory_space<vmem>>, vector<1x8x16xf32>
    %1 = vector.shape_cast %0 : vector<1x8x16xf32> to vector<8x16xf32>
    %cst = arith.constant 0.000000e+00 : f32
    %2 = vector.broadcast %cst : f32 to vector<8x1xf32>
    %3 = tpu.concatenate %2, %1, %2 in 1 : vector<8x1xf32>, vector<8x16xf32>, vector<8x1xf32> -> vector<8x18xf32>
    %c0_2 = arith.constant 0 : index
    %c0_3 = arith.constant 0 : index
    %c0_4 = arith.constant 0 : index
    %4 = vector.load %arg2[%c0_2, %c0_3, %c0_4] : memref<3x16x8xf32, #tpu.memory_space<vmem>>, vector<1x16x8xf32>
    %5 = vector.shape_cast %4 : vector<1x16x8xf32> to vector<16x8xf32>
    %6 = vector.extract_strided_slice %3 {offsets = [0, 0], sizes = [8, 16], strides = [1, 1]} : vector<8x18xf32> to vector<8x16xf32>
    %cst_5 = arith.constant dense<0.000000e+00> : vector<16x16xf32>
    %7 = tpu.matmul %5, %6, %cst_5 {dimension_numbers = #tpu.dot_dimension_numbers<[1], [0], [0], [1], [0, 0, 1, 1], [], []>} : vector<16x8xf32>, vector<8x16xf32>, vector<16x16xf32> -> vector<16x16xf32>
    %c1 = arith.constant 1 : index
    %c0_6 = arith.constant 0 : index
    %c0_7 = arith.constant 0 : index
    %8 = vector.load %arg2[%c1, %c0_6, %c0_7] : memref<3x16x8xf32, #tpu.memory_space<vmem>>, vector<1x16x8xf32>
    %9 = vector.shape_cast %8 : vector<1x16x8xf32> to vector<16x8xf32>
    %10 = vector.extract_strided_slice %3 {offsets = [0, 1], sizes = [8, 16], strides = [1, 1]} : vector<8x18xf32> to vector<8x16xf32>
    %cst_8 = arith.constant dense<0.000000e+00> : vector<16x16xf32>
    %11 = tpu.matmul %9, %10, %cst_8 {dimension_numbers = #tpu.dot_dimension_numbers<[1], [0], [0], [1], [0, 0, 1, 1], [], []>} : vector<16x8xf32>, vector<8x16xf32>, vector<16x16xf32> -> vector<16x16xf32>
    %12 = arith.addf %7, %11 : vector<16x16xf32>
    %c2 = arith.constant 2 : index
    %c0_9 = arith.constant 0 : index
    %c0_10 = arith.constant 0 : index
    %13 = vector.load %arg2[%c2, %c0_9, %c0_10] : memref<3x16x8xf32, #tpu.memory_space<vmem>>, vector<1x16x8xf32>
    %14 = vector.shape_cast %13 : vector<1x16x8xf32> to vector<16x8xf32>
    %15 = vector.extract_strided_slice %3 {offsets = [0, 2], sizes = [8, 16], strides = [1, 1]} : vector<8x18xf32> to vector<8x16xf32>
    %cst_11 = arith.constant dense<0.000000e+00> : vector<16x16xf32>
    %16 = tpu.matmul %14, %15, %cst_11 {dimension_numbers = #tpu.dot_dimension_numbers<[1], [0], [0], [1], [0, 0, 1, 1], [], []>} : vector<16x8xf32>, vector<8x16xf32>, vector<16x16xf32> -> vector<16x16xf32>
    %17 = arith.addf %12, %16 : vector<16x16xf32>
    %c0_12 = arith.constant 0 : index
    %c0_13 = arith.constant 0 : index
    %18 = vector.load %arg3[%c0_12, %c0_13] : memref<16x1xf32, #tpu.memory_space<vmem>>, vector<16x1xf32>
    %19 = vector.broadcast %18 : vector<16x1xf32> to vector<16x16xf32>
    %20 = arith.addf %17, %19 : vector<16x16xf32>
    %cst_14 = arith.constant 0.000000e+00 : f32
    %21 = vector.broadcast %cst_14 : f32 to vector<16x16xf32>
    %22 = arith.maximumf %20, %21 : vector<16x16xf32>
    %23 = vector.extract_strided_slice %22 {offsets = [0, 0], sizes = [4, 16], strides = [1, 1]} : vector<16x16xf32> to vector<4x16xf32>
    %c0_15 = arith.constant 0 : index
    %c0_16 = arith.constant 0 : index
    %c0_17 = arith.constant 0 : index
    %24 = vector.load %arg6[%c0_15, %c0_16, %c0_17] : memref<2x16x16xf32, #tpu.memory_space<vmem>>, vector<1x4x16xf32>
    %25 = vector.shape_cast %24 : vector<1x4x16xf32> to vector<4x16xf32>
    %26 = vector.shape_cast %23 : vector<4x16xf32> to vector<1x4x16xf32>
    tpu.vector_store %arg6[%c0_15, %c0_16, %c0_17], %26 {strides = array<i32>} : memref<2x16x16xf32, #tpu.memory_space<vmem>>, vector<1x4x16xf32>,
    %27 = vector.extract_strided_slice %22 {offsets = [12, 0], sizes = [4, 16], strides = [1, 1]} : vector<16x16xf32> to vector<4x16xf32>
    %c0_18 = arith.constant 0 : index
    %c12 = arith.constant 12 : index
    %c0_19 = arith.constant 0 : index
    %28 = vector.load %arg6[%c0_18, %c12, %c0_19] : memref<2x16x16xf32, #tpu.memory_space<vmem>>, vector<1x4x16xf32>
    %29 = vector.shape_cast %28 : vector<1x4x16xf32> to vector<4x16xf32>
    %30 = vector.shape_cast %27 : vector<4x16xf32> to vector<1x4x16xf32>
    tpu.vector_store %arg6[%c0_18, %c12, %c0_19], %30 {strides = array<i32>} : memref<2x16x16xf32, #tpu.memory_space<vmem>>, vector<1x4x16xf32>,
    %31 = vector.extract_strided_slice %22 {offsets = [4, 0], sizes = [8, 16], strides = [1, 1]} : vector<16x16xf32> to vector<8x16xf32>
    %cst_20 = arith.constant 0.000000e+00 : f32
    %32 = vector.broadcast %cst_20 : f32 to vector<8x2xf32>
    %33 = tpu.concatenate %32, %31, %32 in 1 : vector<8x2xf32>, vector<8x16xf32>, vector<8x2xf32> -> vector<8x20xf32>
    %c0_21 = arith.constant 0 : index
    %c0_22 = arith.constant 0 : index
    %c0_23 = arith.constant 0 : index
    %34 = vector.load %arg4[%c0_21, %c0_22, %c0_23] : memref<5x8x8xf32, #tpu.memory_space<vmem>>, vector<1x8x8xf32>
    %35 = vector.shape_cast %34 : vector<1x8x8xf32> to vector<8x8xf32>
    %36 = vector.extract_strided_slice %33 {offsets = [0, 0], sizes = [8, 16], strides = [1, 1]} : vector<8x20xf32> to vector<8x16xf32>
    %cst_24 = arith.constant dense<0.000000e+00> : vector<8x16xf32>
    %37 = tpu.matmul %35, %36, %cst_24 {dimension_numbers = #tpu.dot_dimension_numbers<[1], [0], [0], [1], [0, 0, 1, 1], [], []>} : vector<8x8xf32>, vector<8x16xf32>, vector<8x16xf32> -> vector<8x16xf32>
    %c1_25 = arith.constant 1 : index
    %c0_26 = arith.constant 0 : index
    %c0_27 = arith.constant 0 : index
    %38 = vector.load %arg4[%c1_25, %c0_26, %c0_27] : memref<5x8x8xf32, #tpu.memory_space<vmem>>, vector<1x8x8xf32>
    %39 = vector.shape_cast %38 : vector<1x8x8xf32> to vector<8x8xf32>
    %40 = vector.extract_strided_slice %33 {offsets = [0, 1], sizes = [8, 16], strides = [1, 1]} : vector<8x20xf32> to vector<8x16xf32>
    %cst_28 = arith.constant dense<0.000000e+00> : vector<8x16xf32>
    %41 = tpu.matmul %39, %40, %cst_28 {dimension_numbers = #tpu.dot_dimension_numbers<[1], [0], [0], [1], [0, 0, 1, 1], [], []>} : vector<8x8xf32>, vector<8x16xf32>, vector<8x16xf32> -> vector<8x16xf32>
    %42 = arith.addf %37, %41 : vector<8x16xf32>
    %c2_29 = arith.constant 2 : index
    %c0_30 = arith.constant 0 : index
    %c0_31 = arith.constant 0 : index
    %43 = vector.load %arg4[%c2_29, %c0_30, %c0_31] : memref<5x8x8xf32, #tpu.memory_space<vmem>>, vector<1x8x8xf32>
    %44 = vector.shape_cast %43 : vector<1x8x8xf32> to vector<8x8xf32>
    %45 = vector.extract_strided_slice %33 {offsets = [0, 2], sizes = [8, 16], strides = [1, 1]} : vector<8x20xf32> to vector<8x16xf32>
    %cst_32 = arith.constant dense<0.000000e+00> : vector<8x16xf32>
    %46 = tpu.matmul %44, %45, %cst_32 {dimension_numbers = #tpu.dot_dimension_numbers<[1], [0], [0], [1], [0, 0, 1, 1], [], []>} : vector<8x8xf32>, vector<8x16xf32>, vector<8x16xf32> -> vector<8x16xf32>
    %47 = arith.addf %42, %46 : vector<8x16xf32>
    %c3 = arith.constant 3 : index
    %c0_33 = arith.constant 0 : index
    %c0_34 = arith.constant 0 : index
    %48 = vector.load %arg4[%c3, %c0_33, %c0_34] : memref<5x8x8xf32, #tpu.memory_space<vmem>>, vector<1x8x8xf32>
    %49 = vector.shape_cast %48 : vector<1x8x8xf32> to vector<8x8xf32>
    %50 = vector.extract_strided_slice %33 {offsets = [0, 3], sizes = [8, 16], strides = [1, 1]} : vector<8x20xf32> to vector<8x16xf32>
    %cst_35 = arith.constant dense<0.000000e+00> : vector<8x16xf32>
    %51 = tpu.matmul %49, %50, %cst_35 {dimension_numbers = #tpu.dot_dimension_numbers<[1], [0], [0], [1], [0, 0, 1, 1], [], []>} : vector<8x8xf32>, vector<8x16xf32>, vector<8x16xf32> -> vector<8x16xf32>
    %52 = arith.addf %47, %51 : vector<8x16xf32>
    %c4 = arith.constant 4 : index
    %c0_36 = arith.constant 0 : index
    %c0_37 = arith.constant 0 : index
    %53 = vector.load %arg4[%c4, %c0_36, %c0_37] : memref<5x8x8xf32, #tpu.memory_space<vmem>>, vector<1x8x8xf32>
    %54 = vector.shape_cast %53 : vector<1x8x8xf32> to vector<8x8xf32>
    %55 = vector.extract_strided_slice %33 {offsets = [0, 4], sizes = [8, 16], strides = [1, 1]} : vector<8x20xf32> to vector<8x16xf32>
    %cst_38 = arith.constant dense<0.000000e+00> : vector<8x16xf32>
    %56 = tpu.matmul %54, %55, %cst_38 {dimension_numbers = #tpu.dot_dimension_numbers<[1], [0], [0], [1], [0, 0, 1, 1], [], []>} : vector<8x8xf32>, vector<8x16xf32>, vector<8x16xf32> -> vector<8x16xf32>
    %57 = arith.addf %52, %56 : vector<8x16xf32>
    %c0_39 = arith.constant 0 : index
    %c0_40 = arith.constant 0 : index
    %58 = vector.load %arg5[%c0_39, %c0_40] : memref<8x1xf32, #tpu.memory_space<vmem>>, vector<8x1xf32>
    %59 = vector.broadcast %58 : vector<8x1xf32> to vector<8x16xf32>
    %60 = arith.addf %57, %59 : vector<8x16xf32>
    %cst_41 = arith.constant 0.000000e+00 : f32
    %61 = vector.broadcast %cst_41 : f32 to vector<8x16xf32>
    %62 = arith.maximumf %60, %61 : vector<8x16xf32>
    %c0_42 = arith.constant 0 : index
    %c4_43 = arith.constant 4 : index
    %c0_44 = arith.constant 0 : index
    %63 = vector.load %arg6[%c0_42, %c4_43, %c0_44] : memref<2x16x16xf32, #tpu.memory_space<vmem>>, vector<1x8x16xf32>
    %64 = vector.shape_cast %63 : vector<1x8x16xf32> to vector<8x16xf32>
    %65 = vector.shape_cast %62 : vector<8x16xf32> to vector<1x8x16xf32>
    tpu.vector_store %arg6[%c0_42, %c4_43, %c0_44], %65 {strides = array<i32>} : memref<2x16x16xf32, #tpu.memory_space<vmem>>, vector<1x8x16xf32>,
    %c1_45 = arith.constant 1 : index
    %c0_46 = arith.constant 0 : index
    %c0_47 = arith.constant 0 : index
    %66 = vector.load %arg1[%c1_45, %c0_46, %c0_47] : memref<2x8x16xf32, #tpu.memory_space<vmem>>, vector<1x8x16xf32>
    %67 = vector.shape_cast %66 : vector<1x8x16xf32> to vector<8x16xf32>
    %cst_48 = arith.constant 0.000000e+00 : f32
    %68 = vector.broadcast %cst_48 : f32 to vector<8x1xf32>
    %69 = tpu.concatenate %68, %67, %68 in 1 : vector<8x1xf32>, vector<8x16xf32>, vector<8x1xf32> -> vector<8x18xf32>
    %c0_49 = arith.constant 0 : index
    %c0_50 = arith.constant 0 : index
    %c0_51 = arith.constant 0 : index
    %70 = vector.load %arg2[%c0_49, %c0_50, %c0_51] : memref<3x16x8xf32, #tpu.memory_space<vmem>>, vector<1x16x8xf32>
    %71 = vector.shape_cast %70 : vector<1x16x8xf32> to vector<16x8xf32>
    %72 = vector.extract_strided_slice %69 {offsets = [0, 0], sizes = [8, 16], strides = [1, 1]} : vector<8x18xf32> to vector<8x16xf32>
    %cst_52 = arith.constant dense<0.000000e+00> : vector<16x16xf32>
    %73 = tpu.matmul %71, %72, %cst_52 {dimension_numbers = #tpu.dot_dimension_numbers<[1], [0], [0], [1], [0, 0, 1, 1], [], []>} : vector<16x8xf32>, vector<8x16xf32>, vector<16x16xf32> -> vector<16x16xf32>
    %c1_53 = arith.constant 1 : index
    %c0_54 = arith.constant 0 : index
    %c0_55 = arith.constant 0 : index
    %74 = vector.load %arg2[%c1_53, %c0_54, %c0_55] : memref<3x16x8xf32, #tpu.memory_space<vmem>>, vector<1x16x8xf32>
    %75 = vector.shape_cast %74 : vector<1x16x8xf32> to vector<16x8xf32>
    %76 = vector.extract_strided_slice %69 {offsets = [0, 1], sizes = [8, 16], strides = [1, 1]} : vector<8x18xf32> to vector<8x16xf32>
    %cst_56 = arith.constant dense<0.000000e+00> : vector<16x16xf32>
    %77 = tpu.matmul %75, %76, %cst_56 {dimension_numbers = #tpu.dot_dimension_numbers<[1], [0], [0], [1], [0, 0, 1, 1], [], []>} : vector<16x8xf32>, vector<8x16xf32>, vector<16x16xf32> -> vector<16x16xf32>
    %78 = arith.addf %73, %77 : vector<16x16xf32>
    %c2_57 = arith.constant 2 : index
    %c0_58 = arith.constant 0 : index
    %c0_59 = arith.constant 0 : index
    %79 = vector.load %arg2[%c2_57, %c0_58, %c0_59] : memref<3x16x8xf32, #tpu.memory_space<vmem>>, vector<1x16x8xf32>
    %80 = vector.shape_cast %79 : vector<1x16x8xf32> to vector<16x8xf32>
    %81 = vector.extract_strided_slice %69 {offsets = [0, 2], sizes = [8, 16], strides = [1, 1]} : vector<8x18xf32> to vector<8x16xf32>
    %cst_60 = arith.constant dense<0.000000e+00> : vector<16x16xf32>
    %82 = tpu.matmul %80, %81, %cst_60 {dimension_numbers = #tpu.dot_dimension_numbers<[1], [0], [0], [1], [0, 0, 1, 1], [], []>} : vector<16x8xf32>, vector<8x16xf32>, vector<16x16xf32> -> vector<16x16xf32>
    %83 = arith.addf %78, %82 : vector<16x16xf32>
    %c0_61 = arith.constant 0 : index
    %c0_62 = arith.constant 0 : index
    %84 = vector.load %arg3[%c0_61, %c0_62] : memref<16x1xf32, #tpu.memory_space<vmem>>, vector<16x1xf32>
    %85 = vector.broadcast %84 : vector<16x1xf32> to vector<16x16xf32>
    %86 = arith.addf %83, %85 : vector<16x16xf32>
    %cst_63 = arith.constant 0.000000e+00 : f32
    %87 = vector.broadcast %cst_63 : f32 to vector<16x16xf32>
    %88 = arith.maximumf %86, %87 : vector<16x16xf32>
    %89 = vector.extract_strided_slice %88 {offsets = [0, 0], sizes = [4, 16], strides = [1, 1]} : vector<16x16xf32> to vector<4x16xf32>
    %c1_64 = arith.constant 1 : index
    %c0_65 = arith.constant 0 : index
    %c0_66 = arith.constant 0 : index
    %90 = vector.load %arg6[%c1_64, %c0_65, %c0_66] : memref<2x16x16xf32, #tpu.memory_space<vmem>>, vector<1x4x16xf32>
    %91 = vector.shape_cast %90 : vector<1x4x16xf32> to vector<4x16xf32>
    %92 = vector.shape_cast %89 : vector<4x16xf32> to vector<1x4x16xf32>
    tpu.vector_store %arg6[%c1_64, %c0_65, %c0_66], %92 {strides = array<i32>} : memref<2x16x16xf32, #tpu.memory_space<vmem>>, vector<1x4x16xf32>,
    %93 = vector.extract_strided_slice %88 {offsets = [12, 0], sizes = [4, 16], strides = [1, 1]} : vector<16x16xf32> to vector<4x16xf32>
    %c1_67 = arith.constant 1 : index
    %c12_68 = arith.constant 12 : index
    %c0_69 = arith.constant 0 : index
    %94 = vector.load %arg6[%c1_67, %c12_68, %c0_69] : memref<2x16x16xf32, #tpu.memory_space<vmem>>, vector<1x4x16xf32>
    %95 = vector.shape_cast %94 : vector<1x4x16xf32> to vector<4x16xf32>
    %96 = vector.shape_cast %93 : vector<4x16xf32> to vector<1x4x16xf32>
    tpu.vector_store %arg6[%c1_67, %c12_68, %c0_69], %96 {strides = array<i32>} : memref<2x16x16xf32, #tpu.memory_space<vmem>>, vector<1x4x16xf32>,
    %97 = vector.extract_strided_slice %88 {offsets = [4, 0], sizes = [8, 16], strides = [1, 1]} : vector<16x16xf32> to vector<8x16xf32>
    %cst_70 = arith.constant 0.000000e+00 : f32
    %98 = vector.broadcast %cst_70 : f32 to vector<8x2xf32>
    %99 = tpu.concatenate %98, %97, %98 in 1 : vector<8x2xf32>, vector<8x16xf32>, vector<8x2xf32> -> vector<8x20xf32>
    %c0_71 = arith.constant 0 : index
    %c0_72 = arith.constant 0 : index
    %c0_73 = arith.constant 0 : index
    %100 = vector.load %arg4[%c0_71, %c0_72, %c0_73] : memref<5x8x8xf32, #tpu.memory_space<vmem>>, vector<1x8x8xf32>
    %101 = vector.shape_cast %100 : vector<1x8x8xf32> to vector<8x8xf32>
    %102 = vector.extract_strided_slice %99 {offsets = [0, 0], sizes = [8, 16], strides = [1, 1]} : vector<8x20xf32> to vector<8x16xf32>
    %cst_74 = arith.constant dense<0.000000e+00> : vector<8x16xf32>
    %103 = tpu.matmul %101, %102, %cst_74 {dimension_numbers = #tpu.dot_dimension_numbers<[1], [0], [0], [1], [0, 0, 1, 1], [], []>} : vector<8x8xf32>, vector<8x16xf32>, vector<8x16xf32> -> vector<8x16xf32>
    %c1_75 = arith.constant 1 : index
    %c0_76 = arith.constant 0 : index
    %c0_77 = arith.constant 0 : index
    %104 = vector.load %arg4[%c1_75, %c0_76, %c0_77] : memref<5x8x8xf32, #tpu.memory_space<vmem>>, vector<1x8x8xf32>
    %105 = vector.shape_cast %104 : vector<1x8x8xf32> to vector<8x8xf32>
    %106 = vector.extract_strided_slice %99 {offsets = [0, 1], sizes = [8, 16], strides = [1, 1]} : vector<8x20xf32> to vector<8x16xf32>
    %cst_78 = arith.constant dense<0.000000e+00> : vector<8x16xf32>
    %107 = tpu.matmul %105, %106, %cst_78 {dimension_numbers = #tpu.dot_dimension_numbers<[1], [0], [0], [1], [0, 0, 1, 1], [], []>} : vector<8x8xf32>, vector<8x16xf32>, vector<8x16xf32> -> vector<8x16xf32>
    %108 = arith.addf %103, %107 : vector<8x16xf32>
    %c2_79 = arith.constant 2 : index
    %c0_80 = arith.constant 0 : index
    %c0_81 = arith.constant 0 : index
    %109 = vector.load %arg4[%c2_79, %c0_80, %c0_81] : memref<5x8x8xf32, #tpu.memory_space<vmem>>, vector<1x8x8xf32>
    %110 = vector.shape_cast %109 : vector<1x8x8xf32> to vector<8x8xf32>
    %111 = vector.extract_strided_slice %99 {offsets = [0, 2], sizes = [8, 16], strides = [1, 1]} : vector<8x20xf32> to vector<8x16xf32>
    %cst_82 = arith.constant dense<0.000000e+00> : vector<8x16xf32>
    %112 = tpu.matmul %110, %111, %cst_82 {dimension_numbers = #tpu.dot_dimension_numbers<[1], [0], [0], [1], [0, 0, 1, 1], [], []>} : vector<8x8xf32>, vector<8x16xf32>, vector<8x16xf32> -> vector<8x16xf32>
    %113 = arith.addf %108, %112 : vector<8x16xf32>
    %c3_83 = arith.constant 3 : index
    %c0_84 = arith.constant 0 : index
    %c0_85 = arith.constant 0 : index
    %114 = vector.load %arg4[%c3_83, %c0_84, %c0_85] : memref<5x8x8xf32, #tpu.memory_space<vmem>>, vector<1x8x8xf32>
    %115 = vector.shape_cast %114 : vector<1x8x8xf32> to vector<8x8xf32>
    %116 = vector.extract_strided_slice %99 {offsets = [0, 3], sizes = [8, 16], strides = [1, 1]} : vector<8x20xf32> to vector<8x16xf32>
    %cst_86 = arith.constant dense<0.000000e+00> : vector<8x16xf32>
    %117 = tpu.matmul %115, %116, %cst_86 {dimension_numbers = #tpu.dot_dimension_numbers<[1], [0], [0], [1], [0, 0, 1, 1], [], []>} : vector<8x8xf32>, vector<8x16xf32>, vector<8x16xf32> -> vector<8x16xf32>
    %118 = arith.addf %113, %117 : vector<8x16xf32>
    %c4_87 = arith.constant 4 : index
    %c0_88 = arith.constant 0 : index
    %c0_89 = arith.constant 0 : index
    %119 = vector.load %arg4[%c4_87, %c0_88, %c0_89] : memref<5x8x8xf32, #tpu.memory_space<vmem>>, vector<1x8x8xf32>
    %120 = vector.shape_cast %119 : vector<1x8x8xf32> to vector<8x8xf32>
    %121 = vector.extract_strided_slice %99 {offsets = [0, 4], sizes = [8, 16], strides = [1, 1]} : vector<8x20xf32> to vector<8x16xf32>
    %cst_90 = arith.constant dense<0.000000e+00> : vector<8x16xf32>
    %122 = tpu.matmul %120, %121, %cst_90 {dimension_numbers = #tpu.dot_dimension_numbers<[1], [0], [0], [1], [0, 0, 1, 1], [], []>} : vector<8x8xf32>, vector<8x16xf32>, vector<8x16xf32> -> vector<8x16xf32>
    %123 = arith.addf %118, %122 : vector<8x16xf32>
    %c0_91 = arith.constant 0 : index
    %c0_92 = arith.constant 0 : index
    %124 = vector.load %arg5[%c0_91, %c0_92] : memref<8x1xf32, #tpu.memory_space<vmem>>, vector<8x1xf32>
    %125 = vector.broadcast %124 : vector<8x1xf32> to vector<8x16xf32>
    %126 = arith.addf %123, %125 : vector<8x16xf32>
    %cst_93 = arith.constant 0.000000e+00 : f32
    %127 = vector.broadcast %cst_93 : f32 to vector<8x16xf32>
    %128 = arith.maximumf %126, %127 : vector<8x16xf32>
    %c1_94 = arith.constant 1 : index
    %c4_95 = arith.constant 4 : index
    %c0_96 = arith.constant 0 : index
    %129 = vector.load %arg6[%c1_94, %c4_95, %c0_96] : memref<2x16x16xf32, #tpu.memory_space<vmem>>, vector<1x8x16xf32>
    %130 = vector.shape_cast %129 : vector<1x8x16xf32> to vector<8x16xf32>
    %131 = vector.shape_cast %128 : vector<8x16xf32> to vector<1x8x16xf32>
    tpu.vector_store %arg6[%c1_94, %c4_95, %c0_96], %131 {strides = array<i32>} : memref<2x16x16xf32, #tpu.memory_space<vmem>>, vector<1x8x16xf32>,
    return
  }
  func.func @transform_0(%arg0: i32) -> (i32, i32, i32) {
    %c0_i32 = arith.constant 0 : i32
    %c0_i32_0 = arith.constant 0 : i32
    %c0_i32_1 = arith.constant 0 : i32
    return %arg0, %c0_i32, %c0_i32_0 : i32, i32, i32
  }
  func.func @transform_1(%arg0: i32) -> (i32, i32, i32) {
    %c0_i32 = arith.constant 0 : i32
    %c0_i32_0 = arith.constant 0 : i32
    %c0_i32_1 = arith.constant 0 : i32
    %c0_i32_2 = arith.constant 0 : i32
    return %c0_i32, %c0_i32_0, %c0_i32_1 : i32, i32, i32
  }
  func.func @transform_2(%arg0: i32) -> (i32, i32) {
    %c0_i32 = arith.constant 0 : i32
    %c0_i32_0 = arith.constant 0 : i32
    %c0_i32_1 = arith.constant 0 : i32
    return %c0_i32, %c0_i32_0 : i32, i32
  }
  func.func @transform_3(%arg0: i32) -> (i32, i32, i32) {
    %c0_i32 = arith.constant 0 : i32
    %c0_i32_0 = arith.constant 0 : i32
    %c0_i32_1 = arith.constant 0 : i32
    %c0_i32_2 = arith.constant 0 : i32
    return %c0_i32, %c0_i32_0, %c0_i32_1 : i32, i32, i32
  }
  func.func @transform_4(%arg0: i32) -> (i32, i32) {
    %c0_i32 = arith.constant 0 : i32
    %c0_i32_0 = arith.constant 0 : i32
    %c0_i32_1 = arith.constant 0 : i32
    return %c0_i32, %c0_i32_0 : i32, i32
  }
  func.func @transform_5(%arg0: i32) -> (i32, i32, i32) {
    %c0_i32 = arith.constant 0 : i32
    %c0_i32_0 = arith.constant 0 : i32
    %c0_i32_1 = arith.constant 0 : i32
    return %arg0, %c0_i32, %c0_i32_0 : i32, i32, i32
  }
}

</mosaic_0001>

<llo_original>
// kernel: inception_forward_pallas.1
$region0: #{inception_forward_pallas.1}
  #allocation0 [shape = 'u32[]', space=smem, size = 0x4, offset = 0x4, fixed_abs, tag = 'smem constant byte address 0x4 - core index']
  #allocation1 [shape = 'u32[144,128]{1,0:T(1,128)}', space=vmem, size = 0x12000, scoped, tag = 'internal scratch']
  %s0 = inlined_call_operand.vmem [shape: f32[4,8,16], index: 0, kind: input, shape index: {}]
  %s1 = inlined_call_operand.vmem [shape: f32[3,16,8], index: 1, kind: input, shape index: {}]
  %s2 = inlined_call_operand.vmem [shape: f32[16,1], index: 2, kind: input, shape index: {}]
  %s3 = inlined_call_operand.vmem [shape: f32[5,8,8], index: 3, kind: input, shape index: {}]
  %s4 = inlined_call_operand.vmem [shape: f32[8,1], index: 4, kind: input, shape index: {}]
  %s5 = inlined_call_operand.hbm [shape: f32[4,16,16], index: 5, kind: output, shape index: {}]
  %s6 = sld [smem:[#allocation0]]
  $region53: #{inception_forward_pallas.1} parent=0
    _
  %s8 = ssub.s32 1, %s6
  %s9 = scalar_select 0, %s8, %s6
  $region1: #{inception_forward_pallas.1} parent=0
    #allocation2 [shape = 'u8[32768]{0}', space=vmem, size = 0x8000, scoped, tag = 'output window, operand 0']
    #allocation3 [shape = 's32[2]{0}', space=sflag, size = 0x8, scoped, tag = 'scoped memory for inception_forward_pallas.1']
    %10 = vsyncpa [#allocation3], 0
    %s11 = scalar_lea.sflag [#allocation3], 1
    %12 = vsyncpa %s11, 0
    loop: start=0, step=1, limit=4
    $region2: #{inception_forward_pallas.1} parent=1 // loop_pre_header
      _
    $region3: #{inception_forward_pallas.1} parent=1 // loop_header
      %s14 = sphi 0, %s18
      %p15 = scmp.ge.s32.totalorder %s14, 4
      %s24 = sphi 0, %s26
      %s27 = sphi 0, %s24
      %s28 = sphi 0, %s27
      %s44 = sphi 0, %s28
      %s48 = sphi 0, %s48
      %s50 = sphi 0, %s48
      %s51 = sphi 0, %s50
      %s65 = sphi 0, %s51
      %s69 = sphi 0, %s69
      %s71 = sphi 0, %s69
      %s72 = sphi 0, %s71
      %s86 = sphi 0, %s72
      %s90 = sphi 0, %s90
      %s92 = sphi 0, %s90
      %s93 = sphi 0, %s92
      %s107 = sphi 0, %s93
      %s111 = sphi 0, %s111
      %s113 = sphi 0, %s111
      %s114 = sphi 0, %s113
      %s128 = sphi 0, %s114
      %s134 = sphi 0, %s136
      %s137 = sphi 0, %s134
      %s138 = sphi 0, %s137
      %s154 = sphi 0, %s138
    $region4: #{inception_forward_pallas.1} parent=1 // loop_header_branch
      %17 = sbr.rel (%p15) target = $region8
    $region5: #{inception_forward_pallas.1} parent=1 // loop_body
      %s19 = ssub.s32 %s14, 1
      %s20 = ssub.s32 %s14, 2
      %s21 = sadd.s32 %s14, 1
      %s22 = ssub.s32 %s14, %s21
      %p23 = scmp.eq.s32.totalorder %s22, 0
      %s25 = sadd.s32 %s24, 1
      %s26 = scalar_select %p23, %s24, %s25
      %p29 = pneg %p23
      %p30 = scmp.eq.s32.totalorder %s14, 1
      %p31 = por %p29, %p30
      %p32 = scmp.ne.s32.totalorder %s24, %s27
      %p33 = scmp.eq.s32.totalorder %s14, 0
      %p34 = por %p32, %p33
      %p35 = scmp.ne.s32.totalorder %s24, %s27
      %p36 = scmp.eq.s32.totalorder %s19, 1
      %p37 = por %p35, %p36
      %p38 = scmp.ne.s32.totalorder %s27, %s28
      %p39 = scmp.eq.s32.totalorder %s19, 0
      %p40 = por %p38, %p39
      %p41 = scmp.ne.s32.totalorder %s27, %s28
      %p42 = scmp.eq.s32.totalorder %s20, 1
      %p43 = por %p41, %p42
      %p45 = scmp.ne.s32.totalorder %s28, %s44
      %p46 = scmp.eq.s32.totalorder %s20, 0
      %p47 = por %p45, %p46
      %s49 = sadd.s32 %s48, 1
      %p52 = scmp.eq.s32.totalorder %s14, 1
      %p53 = scmp.ne.s32.totalorder %s48, %s50
      %p54 = scmp.eq.s32.totalorder %s14, 0
      %p55 = por %p53, %p54
      %p56 = scmp.ne.s32.totalorder %s48, %s50
      %p57 = scmp.eq.s32.totalorder %s19, 1
      %p58 = por %p56, %p57
      %p59 = scmp.ne.s32.totalorder %s50, %s51
      %p60 = scmp.eq.s32.totalorder %s19, 0
      %p61 = por %p59, %p60
      %p62 = scmp.ne.s32.totalorder %s50, %s51
      %p63 = scmp.eq.s32.totalorder %s20, 1
      %p64 = por %p62, %p63
      %p66 = scmp.ne.s32.totalorder %s51, %s65
      %p67 = scmp.eq.s32.totalorder %s20, 0
      %p68 = por %p66, %p67
      %s70 = sadd.s32 %s69, 1
      %p73 = scmp.eq.s32.totalorder %s14, 1
      %p74 = scmp.ne.s32.totalorder %s69, %s71
      %p75 = scmp.eq.s32.totalorder %s14, 0
      %p76 = por %p74, %p75
      %p77 = scmp.ne.s32.totalorder %s69, %s71
      %p78 = scmp.eq.s32.totalorder %s19, 1
      %p79 = por %p77, %p78
      %p80 = scmp.ne.s32.totalorder %s71, %s72
      %p81 = scmp.eq.s32.totalorder %s19, 0
      %p82 = por %p80, %p81
      %p83 = scmp.ne.s32.totalorder %s71, %s72
      %p84 = scmp.eq.s32.totalorder %s20, 1
      %p85 = por %p83, %p84
      %p87 = scmp.ne.s32.totalorder %s72, %s86
      %p88 = scmp.eq.s32.totalorder %s20, 0
      %p89 = por %p87, %p88
      %s91 = sadd.s32 %s90, 1
      %p94 = scmp.eq.s32.totalorder %s14, 1
      %p95 = scmp.ne.s32.totalorder %s90, %s92
      %p96 = scmp.eq.s32.totalorder %s14, 0
      %p97 = por %p95, %p96
      %p98 = scmp.ne.s32.totalorder %s90, %s92
      %p99 = scmp.eq.s32.totalorder %s19, 1
      %p100 = por %p98, %p99
      %p101 = scmp.ne.s32.totalorder %s92, %s93
      %p102 = scmp.eq.s32.totalorder %s19, 0
      %p103 = por %p101, %p102
      %p104 = scmp.ne.s32.totalorder %s92, %s93
      %p105 = scmp.eq.s32.totalorder %s20, 1
      %p106 = por %p104, %p105
      %p108 = scmp.ne.s32.totalorder %s93, %s107
      %p109 = scmp.eq.s32.totalorder %s20, 0
      %p110 = por %p108, %p109
      %s112 = sadd.s32 %s111, 1
      %p115 = scmp.eq.s32.totalorder %s14, 1
      %p116 = scmp.ne.s32.totalorder %s111, %s113
      %p117 = scmp.eq.s32.totalorder %s14, 0
      %p118 = por %p116, %p117
      %p119 = scmp.ne.s32.totalorder %s111, %s113
      %p120 = scmp.eq.s32.totalorder %s19, 1
      %p121 = por %p119, %p120
      %p122 = scmp.ne.s32.totalorder %s113, %s114
      %p123 = scmp.eq.s32.totalorder %s19, 0
      %p124 = por %p122, %p123
      %p125 = scmp.ne.s32.totalorder %s113, %s114
      %p126 = scmp.eq.s32.totalorder %s20, 1
      %p127 = por %p125, %p126
      %p129 = scmp.ne.s32.totalorder %s114, %s128
      %p130 = scmp.eq.s32.totalorder %s20, 0
      %p131 = por %p129, %p130
      %s132 = ssub.s32 %s14, %s21
      %p133 = scmp.eq.s32.totalorder %s132, 0
      %s135 = sadd.s32 %s134, 1
      %s136 = scalar_select %p133, %s134, %s135
      %p139 = pneg %p133
      %p140 = scmp.eq.s32.totalorder %s14, 1
      %p141 = por %p139, %p140
      %p142 = scmp.ne.s32.totalorder %s134, %s137
      %p143 = scmp.eq.s32.totalorder %s14, 0
      %p144 = por %p142, %p143
      %p145 = scmp.ne.s32.totalorder %s134, %s137
      %p146 = scmp.eq.s32.totalorder %s19, 1
      %p147 = por %p145, %p146
      %p148 = scmp.ne.s32.totalorder %s137, %s138
      %p149 = scmp.eq.s32.totalorder %s19, 0
      %p150 = por %p148, %p149
      %p151 = scmp.ne.s32.totalorder %s137, %s138
      %p152 = scmp.eq.s32.totalorder %s20, 1
      %p153 = por %p151, %p152
      %p155 = scmp.ne.s32.totalorder %s138, %s154
      %p156 = scmp.eq.s32.totalorder %s20, 0
      %p157 = por %p155, %p156
      %p158 = scmp.le.s32.totalorder 1, %s14
      %p159 = scmp.lt.s32.totalorder %s14, 3
      %p160 = pnand %p158, %p159
      %p161 = pneg %p160
      // Predicated region
      $region9: #{inception_forward_pallas.1} parent=5 // pred_check
        _
      $region10: #{inception_forward_pallas.1} parent=5 // pred_check_branch
        %163 = sbr.rel (%p160) target = $region12
      $region11: #{inception_forward_pallas.1} parent=5 // pred_region
        %s164 = ssub.s32 %s14, 1
        // Predicated region
        $region13: #{inception_forward_pallas.1} parent=11 // pred_check
          %p165 = pneg %p61
        $region14: #{inception_forward_pallas.1} parent=11 // pred_check_branch
          %167 = sbr.rel (%p165) target = $region16
        $region15: #{inception_forward_pallas.1} parent=11 // pred_region
          _
        $region16: #{inception_forward_pallas.1} parent=11 // pred_fallthru
          _
        // Predicated region
        $region17: #{inception_forward_pallas.1} parent=11 // pred_check
          %p168 = pneg %p82
        $region18: #{inception_forward_pallas.1} parent=11 // pred_check_branch
          %170 = sbr.rel (%p168) target = $region20
        $region19: #{inception_forward_pallas.1} parent=11 // pred_region
          _
        $region20: #{inception_forward_pallas.1} parent=11 // pred_fallthru
          _
        // Predicated region
        $region21: #{inception_forward_pallas.1} parent=11 // pred_check
          %p171 = pneg %p103
        $region22: #{inception_forward_pallas.1} parent=11 // pred_check_branch
          %173 = sbr.rel (%p171) target = $region24
        $region23: #{inception_forward_pallas.1} parent=11 // pred_region
          _
        $region24: #{inception_forward_pallas.1} parent=11 // pred_fallthru
          _
        // Predicated region
        $region25: #{inception_forward_pallas.1} parent=11 // pred_check
          %p174 = pneg %p124
        $region26: #{inception_forward_pallas.1} parent=11 // pred_check_branch
          %176 = sbr.rel (%p174) target = $region28
        $region27: #{inception_forward_pallas.1} parent=11 // pred_region
          _
        $region28: #{inception_forward_pallas.1} parent=11 // pred_fallthru
          _
      $region12: #{inception_forward_pallas.1} parent=5 // pred_fallthru
        _
      %p177 = scmp.lt.s32.totalorder %s14, 2
      // Predicated region
      $region29: #{inception_forward_pallas.1} parent=5 // pred_check
        %p178 = pneg %p177
      $region30: #{inception_forward_pallas.1} parent=5 // pred_check_branch
        %180 = sbr.rel (%p178) target = $region32
      $region31: #{inception_forward_pallas.1} parent=5 // pred_region
        // Predicated region
        $region33: #{inception_forward_pallas.1} parent=31 // pred_check
          %p181 = pneg %p34
        $region34: #{inception_forward_pallas.1} parent=31 // pred_check_branch
          %183 = sbr.rel (%p181) target = $region36
        $region35: #{inception_forward_pallas.1} parent=31 // pred_region
          %s184 = smul.u32 2, %s14
          %p185 = scmp.lt.s32.totalorder %s184, 3
          %s186 = scalar_select %p185, %s184, 3
          %s187 = smul.addr %s186, 8
          %s188 = scalar_lea.vmem %s0, %s187
          %s189 = smul.u32 2, %s14
        $region36: #{inception_forward_pallas.1} parent=31 // pred_fallthru
          _
      $region32: #{inception_forward_pallas.1} parent=5 // pred_fallthru
        _
      %p190 = scmp.le.s32.totalorder 1, %s14
      %p191 = scmp.lt.s32.totalorder %s14, 3
      %p192 = pnand %p190, %p191
      %p193 = pneg %p192
      // Predicated region
      $region37: #{inception_forward_pallas.1} parent=5 // pred_check
        _
      $region38: #{inception_forward_pallas.1} parent=5 // pred_check_branch
        %195 = sbr.rel (%p192) target = $region40
      $region39: #{inception_forward_pallas.1} parent=5 // pred_region
        %s196 = ssub.s32 %s14, 1
        %s197 = smul.u32 2, %s19
        %p198 = scmp.lt.s32.totalorder %s197, 3
        %s199 = scalar_select %p198, %s197, 3
        %s200 = smul.addr %s199, 8
        %s201 = scalar_lea.vmem %s0, %s200
        %p202 = pneg %p40
        %p203 = pneg %p37
        %p204 = pneg %p61
        %p205 = pneg %p58
        %p206 = pneg %p82
        %p207 = pneg %p79
        %p208 = pneg %p103
        %p209 = pneg %p100
        %p210 = pneg %p124
        %p211 = pneg %p121
        %p212 = pneg %p150
        %p213 = pneg %p147
        %s214 = sand.u32 %s137, 1
        %s215 = scalar_lea.sflag [#allocation3], %s214
        %s216 = sand.u32 %s137, 1
        %s217 = smul.addr %s216, 32
        %s218 = scalar_lea.vmem [#allocation2], %s217
        %s219 = smul.u32 2, %s19
        %p220 = scmp.lt.s32.totalorder %s219, 3
        %s221 = scalar_select %p220, %s219, 3
        %s222 = smul.addr %s221, 8
        %s223 = scalar_lea.vmem %s0, %s222
        %s224 = smul.u32 2, %s19
        %s225 = smul.u32 2, %s19
        %v226 = vld [vmem:[%s223] sm:$0xff]
        %228 = vrot.lane.b32.xlu0 %v226, 1
        %v229 = vpop.permute.xlu0 %228
        %vm231 = vcmask 7168
        %v232 = vsel %vm231, 0.0, %v229
        %vm233 = vcmask 138240
        %v234 = vsel %vm233, %v232, 0.0
        %v235 = vld [vmem:[%s1] sm:$0xff]
        %v236 = vld [vmem:[%s1 + $0x8] sm:$0xff]
        %s237 = scalar_lea.vmem %s1, 16
        %v238 = vld [vmem:[%s237] sm:$0xff]
        %v239 = vld [vmem:[%s237 + $0x8] sm:$0xff]
        %241 = vrot.lane.b32.xlu0 %v234, 127
        %v242 = vpop.permute.xlu0 %241
        %vm244 = vcmask 64512
        %v246 = vsel %vm244, %v238, 0
        %v249 = vsel %vm244, %v239, 0
        %251 = vmatprep.subr.mxu0 0.0
        %252 = vmatpush1.msra.mxu0 0.0
        %253 = vmatprep.subr.mxu0 0.0
        %254 = vmatpush1.msra.mxu0 0.0
        %255 = vmatprep.subr.mxu0 0.0
        %256 = vmatpush1.msra.mxu0 0.0
        %257 = vmatprep.subr.mxu0 0.0
        %258 = vmatpush1.msra.mxu0 0.0
        %259 = vmatprep.subr.mxu0 0.0
        %260 = vmatpush1.msra.mxu0 0.0
        %261 = vmatprep.subr.mxu0 0.0
        %262 = vmatpush1.msra.mxu0 0.0
        %263 = vmatprep.subr.mxu0 0.0
        %264 = vmatpush1.msra.mxu0 0.0
        %265 = vmatprep.subr.mxu0 0.0
        %266 = vmatpush1.msra.mxu0 0.0
        %267 = vmatprep.subr.mxu0 0.0
        %268 = vmatpush1.msra.mxu0 0.0
        %269 = vmatprep.subr.mxu0 0.0
        %270 = vmatpush1.msra.mxu0 0.0
        %271 = vmatprep.subr.mxu0 0.0
        %272 = vmatpush1.msra.mxu0 0.0
        %273 = vmatprep.subr.mxu0 0.0
        %274 = vmatpush1.msra.mxu0 0.0
        %275 = vmatprep.subr.mxu0 0.0
        %276 = vmatpush1.msra.mxu0 0.0
        %277 = vmatprep.subr.mxu0 0.0
        %278 = vmatpush1.msra.mxu0 0.0
        %279 = vmatprep.subr.mxu0 0.0
        %280 = vmatpush1.msra.mxu0 0.0
        %281 = vmatprep.subr.mxu0 0.0
        %282 = vmatpush1.msra.mxu0 %v242
        %283 = vmatprep.subr.mxu0 0.0
        %284 = vmatpush2.msra.mxu0 0.0
        %285 = vmatprep.subr.mxu0 0.0
        %286 = vmatpush2.msra.mxu0 0.0
        %287 = vmatprep.subr.mxu0 0.0
        %288 = vmatpush2.msra.mxu0 0.0
        %289 = vmatprep.subr.mxu0 0.0
        %290 = vmatpush2.msra.mxu0 0.0
        %291 = vmatprep.subr.mxu0 0.0
        %292 = vmatpush2.msra.mxu0 0.0
        %293 = vmatprep.subr.mxu0 0.0
        %294 = vmatpush2.msra.mxu0 0.0
        %295 = vmatprep.subr.mxu0 0.0
        %296 = vmatpush2.msra.mxu0 0.0
        %297 = vmatprep.subr.mxu0 0.0
        %298 = vmatpush2.msra.mxu0 0.0
        %299 = vmatprep.subr.mxu0 0.0
        %300 = vmatpush2.msra.mxu0 0.0
        %301 = vmatprep.subr.mxu0 0.0
        %302 = vmatpush2.msra.mxu0 0.0
        %303 = vmatprep.subr.mxu0 0.0
        %304 = vmatpush2.msra.mxu0 0.0
        %305 = vmatprep.subr.mxu0 0.0
        %306 = vmatpush2.msra.mxu0 0.0
        %307 = vmatprep.subr.mxu0 0.0
        %308 = vmatpush2.msra.mxu0 0.0
        %309 = vmatprep.subr.mxu0 0.0
        %310 = vmatpush2.msra.mxu0 0.0
        %311 = vmatprep.subr.mxu0 0.0
        %312 = vmatpush2.msra.mxu0 0.0
        %313 = vmatprep.subr.mxu0 0.0
        %314 = vmatpush2.msra.mxu0 0.0
        %315 = vmatprep.mubr.f32.mxu0 0.0
        %316 = vmatmul.mubr.f32.gmra.mxu0 %v246
        %v317 = vpop.f32.mrf.mxu0
        %v318 = vadd.f32 0.0, %v317
        %v319 = vpop.f32.mrf.mxu0
        %320 = vmatprep.mubr.f32.mxu0 0.0
        %321 = vmatmul.mubr.f32.gmra.mxu0 %v249
        %v322 = vpop.f32.mrf.mxu0
        %v323 = vadd.f32 0.0, %v322
        %v324 = vpop.f32.mrf.mxu0
        %325 = vdwg.mxu0
        %v327 = vsel %vm244, %v235, 0
        %v330 = vsel %vm244, %v236, 0
        %332 = vmatprep.subr.mxu0 0.0
        %333 = vmatpush1.msra.mxu0 0.0
        %334 = vmatprep.subr.mxu0 0.0
        %335 = vmatpush1.msra.mxu0 0.0
        %336 = vmatprep.subr.mxu0 0.0
        %337 = vmatpush1.msra.mxu0 0.0
        %338 = vmatprep.subr.mxu0 0.0
        %339 = vmatpush1.msra.mxu0 0.0
        %340 = vmatprep.subr.mxu0 0.0
        %341 = vmatpush1.msra.mxu0 0.0
        %342 = vmatprep.subr.mxu0 0.0
        %343 = vmatpush1.msra.mxu0 0.0
        %344 = vmatprep.subr.mxu0 0.0
        %345 = vmatpush1.msra.mxu0 0.0
        %346 = vmatprep.subr.mxu0 0.0
        %347 = vmatpush1.msra.mxu0 0.0
        %348 = vmatprep.subr.mxu0 0.0
        %349 = vmatpush1.msra.mxu0 0.0
        %350 = vmatprep.subr.mxu0 0.0
        %351 = vmatpush1.msra.mxu0 0.0
        %352 = vmatprep.subr.mxu0 0.0
        %353 = vmatpush1.msra.mxu0 0.0
        %354 = vmatprep.subr.mxu0 0.0
        %355 = vmatpush1.msra.mxu0 0.0
        %356 = vmatprep.subr.mxu0 0.0
        %357 = vmatpush1.msra.mxu0 0.0
        %358 = vmatprep.subr.mxu0 0.0
        %359 = vmatpush1.msra.mxu0 0.0
        %360 = vmatprep.subr.mxu0 0.0
        %361 = vmatpush1.msra.mxu0 0.0
        %362 = vmatprep.subr.mxu0 0.0
        %363 = vmatpush1.msra.mxu0 %v234
        %364 = vmatprep.subr.mxu0 0.0
        %365 = vmatpush2.msra.mxu0 0.0
        %366 = vmatprep.subr.mxu0 0.0
        %367 = vmatpush2.msra.mxu0 0.0
        %368 = vmatprep.subr.mxu0 0.0
        %369 = vmatpush2.msra.mxu0 0.0
        %370 = vmatprep.subr.mxu0 0.0
        %371 = vmatpush2.msra.mxu0 0.0
        %372 = vmatprep.subr.mxu0 0.0
        %373 = vmatpush2.msra.mxu0 0.0
        %374 = vmatprep.subr.mxu0 0.0
        %375 = vmatpush2.msra.mxu0 0.0
        %376 = vmatprep.subr.mxu0 0.0
        %377 = vmatpush2.msra.mxu0 0.0
        %378 = vmatprep.subr.mxu0 0.0
        %379 = vmatpush2.msra.mxu0 0.0
        %380 = vmatprep.subr.mxu0 0.0
        %381 = vmatpush2.msra.mxu0 0.0
        %382 = vmatprep.subr.mxu0 0.0
        %383 = vmatpush2.msra.mxu0 0.0
        %384 = vmatprep.subr.mxu0 0.0
        %385 = vmatpush2.msra.mxu0 0.0
        %386 = vmatprep.subr.mxu0 0.0
        %387 = vmatpush2.msra.mxu0 0.0
        %388 = vmatprep.subr.mxu0 0.0
        %389 = vmatpush2.msra.mxu0 0.0
        %390 = vmatprep.subr.mxu0 0.0
        %391 = vmatpush2.msra.mxu0 0.0
        %392 = vmatprep.subr.mxu0 0.0
        %393 = vmatpush2.msra.mxu0 0.0
        %394 = vmatprep.subr.mxu0 0.0
        %395 = vmatpush2.msra.mxu0 0.0
        %396 = vmatprep.mubr.f32.mxu0 0.0
        %397 = vmatmul.mubr.f32.gmra.mxu0 %v327
        %v398 = vpop.f32.mrf.mxu0
        %v399 = vadd.f32 %v318, %v398
        %v400 = vpop.f32.mrf.mxu0
        %401 = vmatprep.mubr.f32.mxu0 0.0
        %402 = vmatmul.mubr.f32.gmra.mxu0 %v330
        %v403 = vpop.f32.mrf.mxu0
        %v404 = vadd.f32 %v323, %v403
        %v405 = vpop.f32.mrf.mxu0
        %406 = vdwg.mxu0
        %s407 = scalar_lea.vmem %s1, 32
        %v408 = vld [vmem:[%s407] sm:$0xff]
        %v409 = vld [vmem:[%s407 + $0x8] sm:$0xff]
        %410 = vrot.lane.b32.xlu0 %v234, 126
        %v411 = vpop.permute.xlu0 %410
        %v414 = vsel %vm244, %v408, 0
        %v417 = vsel %vm244, %v409, 0
        %419 = vmatprep.subr.mxu0 0.0
        %420 = vmatpush1.msra.mxu0 0.0
        %421 = vmatprep.subr.mxu0 0.0
        %422 = vmatpush1.msra.mxu0 0.0
        %423 = vmatprep.subr.mxu0 0.0
        %424 = vmatpush1.msra.mxu0 0.0
        %425 = vmatprep.subr.mxu0 0.0
        %426 = vmatpush1.msra.mxu0 0.0
        %427 = vmatprep.subr.mxu0 0.0
        %428 = vmatpush1.msra.mxu0 0.0
        %429 = vmatprep.subr.mxu0 0.0
        %430 = vmatpush1.msra.mxu0 0.0
        %431 = vmatprep.subr.mxu0 0.0
        %432 = vmatpush1.msra.mxu0 0.0
        %433 = vmatprep.subr.mxu0 0.0
        %434 = vmatpush1.msra.mxu0 0.0
        %435 = vmatprep.subr.mxu0 0.0
        %436 = vmatpush1.msra.mxu0 0.0
        %437 = vmatprep.subr.mxu0 0.0
        %438 = vmatpush1.msra.mxu0 0.0
        %439 = vmatprep.subr.mxu0 0.0
        %440 = vmatpush1.msra.mxu0 0.0
        %441 = vmatprep.subr.mxu0 0.0
        %442 = vmatpush1.msra.mxu0 0.0
        %443 = vmatprep.subr.mxu0 0.0
        %444 = vmatpush1.msra.mxu0 0.0
        %445 = vmatprep.subr.mxu0 0.0
        %446 = vmatpush1.msra.mxu0 0.0
        %447 = vmatprep.subr.mxu0 0.0
        %448 = vmatpush1.msra.mxu0 0.0
        %449 = vmatprep.subr.mxu0 0.0
        %450 = vmatpush1.msra.mxu0 %v411
        %451 = vmatprep.subr.mxu0 0.0
        %452 = vmatpush2.msra.mxu0 0.0
        %453 = vmatprep.subr.mxu0 0.0
        %454 = vmatpush2.msra.mxu0 0.0
        %455 = vmatprep.subr.mxu0 0.0
        %456 = vmatpush2.msra.mxu0 0.0
        %457 = vmatprep.subr.mxu0 0.0
        %458 = vmatpush2.msra.mxu0 0.0
        %459 = vmatprep.subr.mxu0 0.0
        %460 = vmatpush2.msra.mxu0 0.0
        %461 = vmatprep.subr.mxu0 0.0
        %462 = vmatpush2.msra.mxu0 0.0
        %463 = vmatprep.subr.mxu0 0.0
        %464 = vmatpush2.msra.mxu0 0.0
        %465 = vmatprep.subr.mxu0 0.0
        %466 = vmatpush2.msra.mxu0 0.0
        %467 = vmatprep.subr.mxu0 0.0
        %468 = vmatpush2.msra.mxu0 0.0
        %469 = vmatprep.subr.mxu0 0.0
        %470 = vmatpush2.msra.mxu0 0.0
        %471 = vmatprep.subr.mxu0 0.0
        %472 = vmatpush2.msra.mxu0 0.0
        %473 = vmatprep.subr.mxu0 0.0
        %474 = vmatpush2.msra.mxu0 0.0
        %475 = vmatprep.subr.mxu0 0.0
        %476 = vmatpush2.msra.mxu0 0.0
        %477 = vmatprep.subr.mxu0 0.0
        %478 = vmatpush2.msra.mxu0 0.0
        %479 = vmatprep.subr.mxu0 0.0
        %480 = vmatpush2.msra.mxu0 0.0
        %481 = vmatprep.subr.mxu0 0.0
        %482 = vmatpush2.msra.mxu0 0.0
        %483 = vmatprep.mubr.f32.mxu0 0.0
        %484 = vmatmul.mubr.f32.gmra.mxu0 %v414
        %v485 = vpop.f32.mrf.mxu0
        %v486 = vadd.f32 0.0, %v485
        %v487 = vpop.f32.mrf.mxu0
        %488 = vmatprep.mubr.f32.mxu0 0.0
        %489 = vmatmul.mubr.f32.gmra.mxu0 %v417
        %v490 = vpop.f32.mrf.mxu0
        %v491 = vadd.f32 0.0, %v490
        %v492 = vpop.f32.mrf.mxu0
        %493 = vdwg.mxu0
        %v494 = vadd.f32 %v399, %v486
        %v495 = vadd.f32 %v404, %v491
        %v496 = vld [vmem:[%s2] sm:$0xff]
        %v497 = vld [vmem:[%s2 + $0x8] sm:$0xff]
        %499 = vset.pattern.permute.xlu0 0
        %500 = vperm.xlu0 %499, %v496
        %v501 = vpop.permute.xlu0 %500
        %504 = vset.pattern.permute.xlu0 0
        %505 = vperm.xlu0 %504, %v497
        %v506 = vpop.permute.xlu0 %505
        %v508 = vadd.f32 %v494, %v501
        %v509 = vadd.f32 %v495, %v506
        %v510 = vmax.f32 %v508, 0.0
        %v511 = vmax.f32 %v509, 0.0
        %vm512 = vcmask 125952
        %513 = vst.msk [vmem:[%s218] sm:$0xf] %vm512, %v510
        %vm514 = vcmask 130052
        %515 = vst.msk [vmem:[%s218 + $0x8] sm:$0xf0] %vm514, %v511
        %vm518 = vcmask 1043456
        %v519 = vrot.slane %v510, 4
        %v520 = vrot.slane %v511, 4
        %v521 = vsel %vm518, %v519, %v520
        %522 = vrot.lane.b32.xlu0 %v521, 2
        %v523 = vpop.permute.xlu0 %522
        %vm525 = vcmask 15360
        %v526 = vsel %vm525, 0.0, %v523
        %vm527 = vcmask 146432
        %v528 = vsel %vm527, %v526, 0.0
        %v529 = vld [vmem:[%s3] sm:$0xff]
        %s530 = scalar_lea.vmem %s3, 8
        %v531 = vld [vmem:[%s530] sm:$0xff]
        %533 = vrot.lane.b32.xlu0 %v528, 127
        %v534 = vpop.permute.xlu0 %533
        %v537 = vsel %vm244, %v531, 0
        %539 = vmatprep.subr.mxu0 0.0
        %540 = vmatpush1.msra.mxu0 0.0
        %541 = vmatprep.subr.mxu0 0.0
        %542 = vmatpush1.msra.mxu0 0.0
        %543 = vmatprep.subr.mxu0 0.0
        %544 = vmatpush1.msra.mxu0 0.0
        %545 = vmatprep.subr.mxu0 0.0
        %546 = vmatpush1.msra.mxu0 0.0
        %547 = vmatprep.subr.mxu0 0.0
        %548 = vmatpush1.msra.mxu0 0.0
        %549 = vmatprep.subr.mxu0 0.0
        %550 = vmatpush1.msra.mxu0 0.0
        %551 = vmatprep.subr.mxu0 0.0
        %552 = vmatpush1.msra.mxu0 0.0
        %553 = vmatprep.subr.mxu0 0.0
        %554 = vmatpush1.msra.mxu0 0.0
        %555 = vmatprep.subr.mxu0 0.0
        %556 = vmatpush1.msra.mxu0 0.0
        %557 = vmatprep.subr.mxu0 0.0
        %558 = vmatpush1.msra.mxu0 0.0
        %559 = vmatprep.subr.mxu0 0.0
        %560 = vmatpush1.msra.mxu0 0.0
        %561 = vmatprep.subr.mxu0 0.0
        %562 = vmatpush1.msra.mxu0 0.0
        %563 = vmatprep.subr.mxu0 0.0
        %564 = vmatpush1.msra.mxu0 0.0
        %565 = vmatprep.subr.mxu0 0.0
        %566 = vmatpush1.msra.mxu0 0.0
        %567 = vmatprep.subr.mxu0 0.0
        %568 = vmatpush1.msra.mxu0 0.0
        %569 = vmatprep.subr.mxu0 0.0
        %570 = vmatpush1.msra.mxu0 %v534
        %571 = vmatprep.subr.mxu0 0.0
        %572 = vmatpush2.msra.mxu0 0.0
        %573 = vmatprep.subr.mxu0 0.0
        %574 = vmatpush2.msra.mxu0 0.0
        %575 = vmatprep.subr.mxu0 0.0
        %576 = vmatpush2.msra.mxu0 0.0
        %577 = vmatprep.subr.mxu0 0.0
        %578 = vmatpush2.msra.mxu0 0.0
        %579 = vmatprep.subr.mxu0 0.0
        %580 = vmatpush2.msra.mxu0 0.0
        %581 = vmatprep.subr.mxu0 0.0
        %582 = vmatpush2.msra.mxu0 0.0
        %583 = vmatprep.subr.mxu0 0.0
        %584 = vmatpush2.msra.mxu0 0.0
        %585 = vmatprep.subr.mxu0 0.0
        %586 = vmatpush2.msra.mxu0 0.0
        %587 = vmatprep.subr.mxu0 0.0
        %588 = vmatpush2.msra.mxu0 0.0
        %589 = vmatprep.subr.mxu0 0.0
        %590 = vmatpush2.msra.mxu0 0.0
        %591 = vmatprep.subr.mxu0 0.0
        %592 = vmatpush2.msra.mxu0 0.0
        %593 = vmatprep.subr.mxu0 0.0
        %594 = vmatpush2.msra.mxu0 0.0
        %595 = vmatprep.subr.mxu0 0.0
        %596 = vmatpush2.msra.mxu0 0.0
        %597 = vmatprep.subr.mxu0 0.0
        %598 = vmatpush2.msra.mxu0 0.0
        %599 = vmatprep.subr.mxu0 0.0
        %600 = vmatpush2.msra.mxu0 0.0
        %601 = vmatprep.subr.mxu0 0.0
        %602 = vmatpush2.msra.mxu0 0.0
        %603 = vmatprep.mubr.f32.mxu0 0.0
        %604 = vmatmul.mubr.f32.gmra.mxu0 %v537
        %v605 = vpop.f32.mrf.mxu0
        %v606 = vadd.f32 0.0, %v605
        %v607 = vpop.f32.mrf.mxu0
        %608 = vdwg.mxu0
        %v610 = vsel %vm244, %v529, 0
        %612 = vmatprep.subr.mxu0 0.0
        %613 = vmatpush1.msra.mxu0 0.0
        %614 = vmatprep.subr.mxu0 0.0
        %615 = vmatpush1.msra.mxu0 0.0
        %616 = vmatprep.subr.mxu0 0.0
        %617 = vmatpush1.msra.mxu0 0.0
        %618 = vmatprep.subr.mxu0 0.0
        %619 = vmatpush1.msra.mxu0 0.0
        %620 = vmatprep.subr.mxu0 0.0
        %621 = vmatpush1.msra.mxu0 0.0
        %622 = vmatprep.subr.mxu0 0.0
        %623 = vmatpush1.msra.mxu0 0.0
        %624 = vmatprep.subr.mxu0 0.0
        %625 = vmatpush1.msra.mxu0 0.0
        %626 = vmatprep.subr.mxu0 0.0
        %627 = vmatpush1.msra.mxu0 0.0
        %628 = vmatprep.subr.mxu0 0.0
        %629 = vmatpush1.msra.mxu0 0.0
        %630 = vmatprep.subr.mxu0 0.0
        %631 = vmatpush1.msra.mxu0 0.0
        %632 = vmatprep.subr.mxu0 0.0
        %633 = vmatpush1.msra.mxu0 0.0
        %634 = vmatprep.subr.mxu0 0.0
        %635 = vmatpush1.msra.mxu0 0.0
        %636 = vmatprep.subr.mxu0 0.0
        %637 = vmatpush1.msra.mxu0 0.0
        %638 = vmatprep.subr.mxu0 0.0
        %639 = vmatpush1.msra.mxu0 0.0
        %640 = vmatprep.subr.mxu0 0.0
        %641 = vmatpush1.msra.mxu0 0.0
        %642 = vmatprep.subr.mxu0 0.0
        %643 = vmatpush1.msra.mxu0 %v528
        %644 = vmatprep.subr.mxu0 0.0
        %645 = vmatpush2.msra.mxu0 0.0
        %646 = vmatprep.subr.mxu0 0.0
        %647 = vmatpush2.msra.mxu0 0.0
        %648 = vmatprep.subr.mxu0 0.0
        %649 = vmatpush2.msra.mxu0 0.0
        %650 = vmatprep.subr.mxu0 0.0
        %651 = vmatpush2.msra.mxu0 0.0
        %652 = vmatprep.subr.mxu0 0.0
        %653 = vmatpush2.msra.mxu0 0.0
        %654 = vmatprep.subr.mxu0 0.0
        %655 = vmatpush2.msra.mxu0 0.0
        %656 = vmatprep.subr.mxu0 0.0
        %657 = vmatpush2.msra.mxu0 0.0
        %658 = vmatprep.subr.mxu0 0.0
        %659 = vmatpush2.msra.mxu0 0.0
        %660 = vmatprep.subr.mxu0 0.0
        %661 = vmatpush2.msra.mxu0 0.0
        %662 = vmatprep.subr.mxu0 0.0
        %663 = vmatpush2.msra.mxu0 0.0
        %664 = vmatprep.subr.mxu0 0.0
        %665 = vmatpush2.msra.mxu0 0.0
        %666 = vmatprep.subr.mxu0 0.0
        %667 = vmatpush2.msra.mxu0 0.0
        %668 = vmatprep.subr.mxu0 0.0
        %669 = vmatpush2.msra.mxu0 0.0
        %670 = vmatprep.subr.mxu0 0.0
        %671 = vmatpush2.msra.mxu0 0.0
        %672 = vmatprep.subr.mxu0 0.0
        %673 = vmatpush2.msra.mxu0 0.0
        %674 = vmatprep.subr.mxu0 0.0
        %675 = vmatpush2.msra.mxu0 0.0
        %676 = vmatprep.mubr.f32.mxu0 0.0
        %677 = vmatmul.mubr.f32.gmra.mxu0 %v610
        %v678 = vpop.f32.mrf.mxu0
        %v679 = vadd.f32 %v606, %v678
        %v680 = vpop.f32.mrf.mxu0
        %681 = vdwg.mxu0
        %s682 = scalar_lea.vmem %s3, 16
        %v683 = vld [vmem:[%s682] sm:$0xff]
        %684 = vrot.lane.b32.xlu0 %v528, 126
        %v685 = vpop.permute.xlu0 %684
        %v688 = vsel %vm244, %v683, 0
        %690 = vmatprep.subr.mxu0 0.0
        %691 = vmatpush1.msra.mxu0 0.0
        %692 = vmatprep.subr.mxu0 0.0
        %693 = vmatpush1.msra.mxu0 0.0
        %694 = vmatprep.subr.mxu0 0.0
        %695 = vmatpush1.msra.mxu0 0.0
        %696 = vmatprep.subr.mxu0 0.0
        %697 = vmatpush1.msra.mxu0 0.0
        %698 = vmatprep.subr.mxu0 0.0
        %699 = vmatpush1.msra.mxu0 0.0
        %700 = vmatprep.subr.mxu0 0.0
        %701 = vmatpush1.msra.mxu0 0.0
        %702 = vmatprep.subr.mxu0 0.0
        %703 = vmatpush1.msra.mxu0 0.0
        %704 = vmatprep.subr.mxu0 0.0
        %705 = vmatpush1.msra.mxu0 0.0
        %706 = vmatprep.subr.mxu0 0.0
        %707 = vmatpush1.msra.mxu0 0.0
        %708 = vmatprep.subr.mxu0 0.0
        %709 = vmatpush1.msra.mxu0 0.0
        %710 = vmatprep.subr.mxu0 0.0
        %711 = vmatpush1.msra.mxu0 0.0
        %712 = vmatprep.subr.mxu0 0.0
        %713 = vmatpush1.msra.mxu0 0.0
        %714 = vmatprep.subr.mxu0 0.0
        %715 = vmatpush1.msra.mxu0 0.0
        %716 = vmatprep.subr.mxu0 0.0
        %717 = vmatpush1.msra.mxu0 0.0
        %718 = vmatprep.subr.mxu0 0.0
        %719 = vmatpush1.msra.mxu0 0.0
        %720 = vmatprep.subr.mxu0 0.0
        %721 = vmatpush1.msra.mxu0 %v685
        %722 = vmatprep.subr.mxu0 0.0
        %723 = vmatpush2.msra.mxu0 0.0
        %724 = vmatprep.subr.mxu0 0.0
        %725 = vmatpush2.msra.mxu0 0.0
        %726 = vmatprep.subr.mxu0 0.0
        %727 = vmatpush2.msra.mxu0 0.0
        %728 = vmatprep.subr.mxu0 0.0
        %729 = vmatpush2.msra.mxu0 0.0
        %730 = vmatprep.subr.mxu0 0.0
        %731 = vmatpush2.msra.mxu0 0.0
        %732 = vmatprep.subr.mxu0 0.0
        %733 = vmatpush2.msra.mxu0 0.0
        %734 = vmatprep.subr.mxu0 0.0
        %735 = vmatpush2.msra.mxu0 0.0
        %736 = vmatprep.subr.mxu0 0.0
        %737 = vmatpush2.msra.mxu0 0.0
        %738 = vmatprep.subr.mxu0 0.0
        %739 = vmatpush2.msra.mxu0 0.0
        %740 = vmatprep.subr.mxu0 0.0
        %741 = vmatpush2.msra.mxu0 0.0
        %742 = vmatprep.subr.mxu0 0.0
        %743 = vmatpush2.msra.mxu0 0.0
        %744 = vmatprep.subr.mxu0 0.0
        %745 = vmatpush2.msra.mxu0 0.0
        %746 = vmatprep.subr.mxu0 0.0
        %747 = vmatpush2.msra.mxu0 0.0
        %748 = vmatprep.subr.mxu0 0.0
        %749 = vmatpush2.msra.mxu0 0.0
        %750 = vmatprep.subr.mxu0 0.0
        %751 = vmatpush2.msra.mxu0 0.0
        %752 = vmatprep.subr.mxu0 0.0
        %753 = vmatpush2.msra.mxu0 0.0
        %754 = vmatprep.mubr.f32.mxu0 0.0
        %755 = vmatmul.mubr.f32.gmra.mxu0 %v688
        %v756 = vpop.f32.mrf.mxu0
        %v757 = vadd.f32 0.0, %v756
        %v758 = vpop.f32.mrf.mxu0
        %759 = vdwg.mxu0
        %v760 = vadd.f32 %v679, %v757
        %s761 = scalar_lea.vmem %s3, 24
        %v762 = vld [vmem:[%s761] sm:$0xff]
        %763 = vrot.lane.b32.xlu0 %v528, 125
        %v764 = vpop.permute.xlu0 %763
        %v767 = vsel %vm244, %v762, 0
        %769 = vmatprep.subr.mxu0 0.0
        %770 = vmatpush1.msra.mxu0 0.0
        %771 = vmatprep.subr.mxu0 0.0
        %772 = vmatpush1.msra.mxu0 0.0
        %773 = vmatprep.subr.mxu0 0.0
        %774 = vmatpush1.msra.mxu0 0.0
        %775 = vmatprep.subr.mxu0 0.0
        %776 = vmatpush1.msra.mxu0 0.0
        %777 = vmatprep.subr.mxu0 0.0
        %778 = vmatpush1.msra.mxu0 0.0
        %779 = vmatprep.subr.mxu0 0.0
        %780 = vmatpush1.msra.mxu0 0.0
        %781 = vmatprep.subr.mxu0 0.0
        %782 = vmatpush1.msra.mxu0 0.0
        %783 = vmatprep.subr.mxu0 0.0
        %784 = vmatpush1.msra.mxu0 0.0
        %785 = vmatprep.subr.mxu0 0.0
        %786 = vmatpush1.msra.mxu0 0.0
        %787 = vmatprep.subr.mxu0 0.0
        %788 = vmatpush1.msra.mxu0 0.0
        %789 = vmatprep.subr.mxu0 0.0
        %790 = vmatpush1.msra.mxu0 0.0
        %791 = vmatprep.subr.mxu0 0.0
        %792 = vmatpush1.msra.mxu0 0.0
        %793 = vmatprep.subr.mxu0 0.0
        %794 = vmatpush1.msra.mxu0 0.0
        %795 = vmatprep.subr.mxu0 0.0
        %796 = vmatpush1.msra.mxu0 0.0
        %797 = vmatprep.subr.mxu0 0.0
        %798 = vmatpush1.msra.mxu0 0.0
        %799 = vmatprep.subr.mxu0 0.0
        %800 = vmatpush1.msra.mxu0 %v764
        %801 = vmatprep.subr.mxu0 0.0
        %802 = vmatpush2.msra.mxu0 0.0
        %803 = vmatprep.subr.mxu0 0.0
        %804 = vmatpush2.msra.mxu0 0.0
        %805 = vmatprep.subr.mxu0 0.0
        %806 = vmatpush2.msra.mxu0 0.0
        %807 = vmatprep.subr.mxu0 0.0
        %808 = vmatpush2.msra.mxu0 0.0
        %809 = vmatprep.subr.mxu0 0.0
        %810 = vmatpush2.msra.mxu0 0.0
        %811 = vmatprep.subr.mxu0 0.0
        %812 = vmatpush2.msra.mxu0 0.0
        %813 = vmatprep.subr.mxu0 0.0
        %814 = vmatpush2.msra.mxu0 0.0
        %815 = vmatprep.subr.mxu0 0.0
        %816 = vmatpush2.msra.mxu0 0.0
        %817 = vmatprep.subr.mxu0 0.0
        %818 = vmatpush2.msra.mxu0 0.0
        %819 = vmatprep.subr.mxu0 0.0
        %820 = vmatpush2.msra.mxu0 0.0
        %821 = vmatprep.subr.mxu0 0.0
        %822 = vmatpush2.msra.mxu0 0.0
        %823 = vmatprep.subr.mxu0 0.0
        %824 = vmatpush2.msra.mxu0 0.0
        %825 = vmatprep.subr.mxu0 0.0
        %826 = vmatpush2.msra.mxu0 0.0
        %827 = vmatprep.subr.mxu0 0.0
        %828 = vmatpush2.msra.mxu0 0.0
        %829 = vmatprep.subr.mxu0 0.0
        %830 = vmatpush2.msra.mxu0 0.0
        %831 = vmatprep.subr.mxu0 0.0
        %832 = vmatpush2.msra.mxu0 0.0
        %833 = vmatprep.mubr.f32.mxu0 0.0
        %834 = vmatmul.mubr.f32.gmra.mxu0 %v767
        %v835 = vpop.f32.mrf.mxu0
        %v836 = vadd.f32 0.0, %v835
        %v837 = vpop.f32.mrf.mxu0
        %838 = vdwg.mxu0
        %v839 = vadd.f32 %v760, %v836
        %s840 = scalar_lea.vmem %s3, 32
        %v841 = vld [vmem:[%s840] sm:$0xff]
        %842 = vrot.lane.b32.xlu0 %v528, 124
        %v843 = vpop.permute.xlu0 %842
        %v846 = vsel %vm244, %v841, 0
        %848 = vmatprep.subr.mxu0 0.0
        %849 = vmatpush1.msra.mxu0 0.0
        %850 = vmatprep.subr.mxu0 0.0
        %851 = vmatpush1.msra.mxu0 0.0
        %852 = vmatprep.subr.mxu0 0.0
        %853 = vmatpush1.msra.mxu0 0.0
        %854 = vmatprep.subr.mxu0 0.0
        %855 = vmatpush1.msra.mxu0 0.0
        %856 = vmatprep.subr.mxu0 0.0
        %857 = vmatpush1.msra.mxu0 0.0
        %858 = vmatprep.subr.mxu0 0.0
        %859 = vmatpush1.msra.mxu0 0.0
        %860 = vmatprep.subr.mxu0 0.0
        %861 = vmatpush1.msra.mxu0 0.0
        %862 = vmatprep.subr.mxu0 0.0
        %863 = vmatpush1.msra.mxu0 0.0
        %864 = vmatprep.subr.mxu0 0.0
        %865 = vmatpush1.msra.mxu0 0.0
        %866 = vmatprep.subr.mxu0 0.0
        %867 = vmatpush1.msra.mxu0 0.0
        %868 = vmatprep.subr.mxu0 0.0
        %869 = vmatpush1.msra.mxu0 0.0
        %870 = vmatprep.subr.mxu0 0.0
        %871 = vmatpush1.msra.mxu0 0.0
        %872 = vmatprep.subr.mxu0 0.0
        %873 = vmatpush1.msra.mxu0 0.0
        %874 = vmatprep.subr.mxu0 0.0
        %875 = vmatpush1.msra.mxu0 0.0
        %876 = vmatprep.subr.mxu0 0.0
        %877 = vmatpush1.msra.mxu0 0.0
        %878 = vmatprep.subr.mxu0 0.0
        %879 = vmatpush1.msra.mxu0 %v843
        %880 = vmatprep.subr.mxu0 0.0
        %881 = vmatpush2.msra.mxu0 0.0
        %882 = vmatprep.subr.mxu0 0.0
        %883 = vmatpush2.msra.mxu0 0.0
        %884 = vmatprep.subr.mxu0 0.0
        %885 = vmatpush2.msra.mxu0 0.0
        %886 = vmatprep.subr.mxu0 0.0
        %887 = vmatpush2.msra.mxu0 0.0
        %888 = vmatprep.subr.mxu0 0.0
        %889 = vmatpush2.msra.mxu0 0.0
        %890 = vmatprep.subr.mxu0 0.0
        %891 = vmatpush2.msra.mxu0 0.0
        %892 = vmatprep.subr.mxu0 0.0
        %893 = vmatpush2.msra.mxu0 0.0
        %894 = vmatprep.subr.mxu0 0.0
        %895 = vmatpush2.msra.mxu0 0.0
        %896 = vmatprep.subr.mxu0 0.0
        %897 = vmatpush2.msra.mxu0 0.0
        %898 = vmatprep.subr.mxu0 0.0
        %899 = vmatpush2.msra.mxu0 0.0
        %900 = vmatprep.subr.mxu0 0.0
        %901 = vmatpush2.msra.mxu0 0.0
        %902 = vmatprep.subr.mxu0 0.0
        %903 = vmatpush2.msra.mxu0 0.0
        %904 = vmatprep.subr.mxu0 0.0
        %905 = vmatpush2.msra.mxu0 0.0
        %906 = vmatprep.subr.mxu0 0.0
        %907 = vmatpush2.msra.mxu0 0.0
        %908 = vmatprep.subr.mxu0 0.0
        %909 = vmatpush2.msra.mxu0 0.0
        %910 = vmatprep.subr.mxu0 0.0
        %911 = vmatpush2.msra.mxu0 0.0
        %912 = vmatprep.mubr.f32.mxu0 0.0
        %913 = vmatmul.mubr.f32.gmra.mxu0 %v846
        %v914 = vpop.f32.mrf.mxu0
        %v915 = vadd.f32 0.0, %v914
        %v916 = vpop.f32.mrf.mxu0
        %917 = vdwg.mxu0
        %v918 = vadd.f32 %v839, %v915
        %v919 = vld [vmem:[%s4] sm:$0xff]
        %921 = vset.pattern.permute.xlu0 0
        %922 = vperm.xlu0 %921, %v919
        %v923 = vpop.permute.xlu0 %922
        %v925 = vadd.f32 %v918, %v923
        %v926 = vmax.f32 %v925, 0.0
        %vm927 = vcmask 130048
        %928 = vst.msk [vmem:[%s218 + $0x4] sm:$0xff] %vm927, %v926
        %s929 = scalar_lea.vmem %s223, 8
        %v930 = vld [vmem:[%s929] sm:$0xff]
        %932 = vrot.lane.b32.xlu0 %v930, 1
        %v933 = vpop.permute.xlu0 %932
        %v935 = vsel %vm231, 0.0, %v933
        %v936 = vsel %vm233, %v935, 0.0
        %v937 = vld [vmem:[%s1] sm:$0xff]
        %v938 = vld [vmem:[%s1 + $0x8] sm:$0xff]
        %v939 = vld [vmem:[%s237] sm:$0xff]
        %v940 = vld [vmem:[%s237 + $0x8] sm:$0xff]
        %942 = vrot.lane.b32.xlu0 %v936, 127
        %v943 = vpop.permute.xlu0 %942
        %v946 = vsel %vm244, %v939, 0
        %v949 = vsel %vm244, %v940, 0
        %951 = vmatprep.subr.mxu0 0.0
        %952 = vmatpush1.msra.mxu0 0.0
        %953 = vmatprep.subr.mxu0 0.0
        %954 = vmatpush1.msra.mxu0 0.0
        %955 = vmatprep.subr.mxu0 0.0
        %956 = vmatpush1.msra.mxu0 0.0
        %957 = vmatprep.subr.mxu0 0.0
        %958 = vmatpush1.msra.mxu0 0.0
        %959 = vmatprep.subr.mxu0 0.0
        %960 = vmatpush1.msra.mxu0 0.0
        %961 = vmatprep.subr.mxu0 0.0
        %962 = vmatpush1.msra.mxu0 0.0
        %963 = vmatprep.subr.mxu0 0.0
        %964 = vmatpush1.msra.mxu0 0.0
        %965 = vmatprep.subr.mxu0 0.0
        %966 = vmatpush1.msra.mxu0 0.0
        %967 = vmatprep.subr.mxu0 0.0
        %968 = vmatpush1.msra.mxu0 0.0
        %969 = vmatprep.subr.mxu0 0.0
        %970 = vmatpush1.msra.mxu0 0.0
        %971 = vmatprep.subr.mxu0 0.0
        %972 = vmatpush1.msra.mxu0 0.0
        %973 = vmatprep.subr.mxu0 0.0
        %974 = vmatpush1.msra.mxu0 0.0
        %975 = vmatprep.subr.mxu0 0.0
        %976 = vmatpush1.msra.mxu0 0.0
        %977 = vmatprep.subr.mxu0 0.0
        %978 = vmatpush1.msra.mxu0 0.0
        %979 = vmatprep.subr.mxu0 0.0
        %980 = vmatpush1.msra.mxu0 0.0
        %981 = vmatprep.subr.mxu0 0.0
        %982 = vmatpush1.msra.mxu0 %v943
        %983 = vmatprep.subr.mxu0 0.0
        %984 = vmatpush2.msra.mxu0 0.0
        %985 = vmatprep.subr.mxu0 0.0
        %986 = vmatpush2.msra.mxu0 0.0
        %987 = vmatprep.subr.mxu0 0.0
        %988 = vmatpush2.msra.mxu0 0.0
        %989 = vmatprep.subr.mxu0 0.0
        %990 = vmatpush2.msra.mxu0 0.0
        %991 = vmatprep.subr.mxu0 0.0
        %992 = vmatpush2.msra.mxu0 0.0
        %993 = vmatprep.subr.mxu0 0.0
        %994 = vmatpush2.msra.mxu0 0.0
        %995 = vmatprep.subr.mxu0 0.0
        %996 = vmatpush2.msra.mxu0 0.0
        %997 = vmatprep.subr.mxu0 0.0
        %998 = vmatpush2.msra.mxu0 0.0
        %999 = vmatprep.subr.mxu0 0.0
        %1000 = vmatpush2.msra.mxu0 0.0
        %1001 = vmatprep.subr.mxu0 0.0
        %1002 = vmatpush2.msra.mxu0 0.0
        %1003 = vmatprep.subr.mxu0 0.0
        %1004 = vmatpush2.msra.mxu0 0.0
        %1005 = vmatprep.subr.mxu0 0.0
        %1006 = vmatpush2.msra.mxu0 0.0
        %1007 = vmatprep.subr.mxu0 0.0
        %1008 = vmatpush2.msra.mxu0 0.0
        %1009 = vmatprep.subr.mxu0 0.0
        %1010 = vmatpush2.msra.mxu0 0.0
        %1011 = vmatprep.subr.mxu0 0.0
        %1012 = vmatpush2.msra.mxu0 0.0
        %1013 = vmatprep.subr.mxu0 0.0
        %1014 = vmatpush2.msra.mxu0 0.0
        %1015 = vmatprep.mubr.f32.mxu0 0.0
        %1016 = vmatmul.mubr.f32.gmra.mxu0 %v946
        %v1017 = vpop.f32.mrf.mxu0
        %v1018 = vadd.f32 0.0, %v1017
        %v1019 = vpop.f32.mrf.mxu0
        %1020 = vmatprep.mubr.f32.mxu0 0.0
        %1021 = vmatmul.mubr.f32.gmra.mxu0 %v949
        %v1022 = vpop.f32.mrf.mxu0
        %v1023 = vadd.f32 0.0, %v1022
        %v1024 = vpop.f32.mrf.mxu0
        %1025 = vdwg.mxu0
        %v1027 = vsel %vm244, %v937, 0
        %v1030 = vsel %vm244, %v938, 0
        %1032 = vmatprep.subr.mxu0 0.0
        %1033 = vmatpush1.msra.mxu0 0.0
        %1034 = vmatprep.subr.mxu0 0.0
        %1035 = vmatpush1.msra.mxu0 0.0
        %1036 = vmatprep.subr.mxu0 0.0
        %1037 = vmatpush1.msra.mxu0 0.0
        %1038 = vmatprep.subr.mxu0 0.0
        %1039 = vmatpush1.msra.mxu0 0.0
        %1040 = vmatprep.subr.mxu0 0.0
        %1041 = vmatpush1.msra.mxu0 0.0
        %1042 = vmatprep.subr.mxu0 0.0
        %1043 = vmatpush1.msra.mxu0 0.0
        %1044 = vmatprep.subr.mxu0 0.0
        %1045 = vmatpush1.msra.mxu0 0.0
        %1046 = vmatprep.subr.mxu0 0.0
        %1047 = vmatpush1.msra.mxu0 0.0
        %1048 = vmatprep.subr.mxu0 0.0
        %1049 = vmatpush1.msra.mxu0 0.0
        %1050 = vmatprep.subr.mxu0 0.0
        %1051 = vmatpush1.msra.mxu0 0.0
        %1052 = vmatprep.subr.mxu0 0.0
        %1053 = vmatpush1.msra.mxu0 0.0
        %1054 = vmatprep.subr.mxu0 0.0
        %1055 = vmatpush1.msra.mxu0 0.0
        %1056 = vmatprep.subr.mxu0 0.0
        %1057 = vmatpush1.msra.mxu0 0.0
        %1058 = vmatprep.subr.mxu0 0.0
        %1059 = vmatpush1.msra.mxu0 0.0
        %1060 = vmatprep.subr.mxu0 0.0
        %1061 = vmatpush1.msra.mxu0 0.0
        %1062 = vmatprep.subr.mxu0 0.0
        %1063 = vmatpush1.msra.mxu0 %v936
        %1064 = vmatprep.subr.mxu0 0.0
        %1065 = vmatpush2.msra.mxu0 0.0
        %1066 = vmatprep.subr.mxu0 0.0
        %1067 = vmatpush2.msra.mxu0 0.0
        %1068 = vmatprep.subr.mxu0 0.0
        %1069 = vmatpush2.msra.mxu0 0.0
        %1070 = vmatprep.subr.mxu0 0.0
        %1071 = vmatpush2.msra.mxu0 0.0
        %1072 = vmatprep.subr.mxu0 0.0
        %1073 = vmatpush2.msra.mxu0 0.0
        %1074 = vmatprep.subr.mxu0 0.0
        %1075 = vmatpush2.msra.mxu0 0.0
        %1076 = vmatprep.subr.mxu0 0.0
        %1077 = vmatpush2.msra.mxu0 0.0
        %1078 = vmatprep.subr.mxu0 0.0
        %1079 = vmatpush2.msra.mxu0 0.0
        %1080 = vmatprep.subr.mxu0 0.0
        %1081 = vmatpush2.msra.mxu0 0.0
        %1082 = vmatprep.subr.mxu0 0.0
        %1083 = vmatpush2.msra.mxu0 0.0
        %1084 = vmatprep.subr.mxu0 0.0
        %1085 = vmatpush2.msra.mxu0 0.0
        %1086 = vmatprep.subr.mxu0 0.0
        %1087 = vmatpush2.msra.mxu0 0.0
        %1088 = vmatprep.subr.mxu0 0.0
        %1089 = vmatpush2.msra.mxu0 0.0
        %1090 = vmatprep.subr.mxu0 0.0
        %1091 = vmatpush2.msra.mxu0 0.0
        %1092 = vmatprep.subr.mxu0 0.0
        %1093 = vmatpush2.msra.mxu0 0.0
        %1094 = vmatprep.subr.mxu0 0.0
        %1095 = vmatpush2.msra.mxu0 0.0
        %1096 = vmatprep.mubr.f32.mxu0 0.0
        %1097 = vmatmul.mubr.f32.gmra.mxu0 %v1027
        %v1098 = vpop.f32.mrf.mxu0
        %v1099 = vadd.f32 %v1018, %v1098
        %v1100 = vpop.f32.mrf.mxu0
        %1101 = vmatprep.mubr.f32.mxu0 0.0
        %1102 = vmatmul.mubr.f32.gmra.mxu0 %v1030
        %v1103 = vpop.f32.mrf.mxu0
        %v1104 = vadd.f32 %v1023, %v1103
        %v1105 = vpop.f32.mrf.mxu0
        %1106 = vdwg.mxu0
        %v1107 = vld [vmem:[%s407] sm:$0xff]
        %v1108 = vld [vmem:[%s407 + $0x8] sm:$0xff]
        %1109 = vrot.lane.b32.xlu0 %v936, 126
        %v1110 = vpop.permute.xlu0 %1109
        %v1113 = vsel %vm244, %v1107, 0
        %v1116 = vsel %vm244, %v1108, 0
        %1118 = vmatprep.subr.mxu0 0.0
        %1119 = vmatpush1.msra.mxu0 0.0
        %1120 = vmatprep.subr.mxu0 0.0
        %1121 = vmatpush1.msra.mxu0 0.0
        %1122 = vmatprep.subr.mxu0 0.0
        %1123 = vmatpush1.msra.mxu0 0.0
        %1124 = vmatprep.subr.mxu0 0.0
        %1125 = vmatpush1.msra.mxu0 0.0
        %1126 = vmatprep.subr.mxu0 0.0
        %1127 = vmatpush1.msra.mxu0 0.0
        %1128 = vmatprep.subr.mxu0 0.0
        %1129 = vmatpush1.msra.mxu0 0.0
        %1130 = vmatprep.subr.mxu0 0.0
        %1131 = vmatpush1.msra.mxu0 0.0
        %1132 = vmatprep.subr.mxu0 0.0
        %1133 = vmatpush1.msra.mxu0 0.0
        %1134 = vmatprep.subr.mxu0 0.0
        %1135 = vmatpush1.msra.mxu0 0.0
        %1136 = vmatprep.subr.mxu0 0.0
        %1137 = vmatpush1.msra.mxu0 0.0
        %1138 = vmatprep.subr.mxu0 0.0
        %1139 = vmatpush1.msra.mxu0 0.0
        %1140 = vmatprep.subr.mxu0 0.0
        %1141 = vmatpush1.msra.mxu0 0.0
        %1142 = vmatprep.subr.mxu0 0.0
        %1143 = vmatpush1.msra.mxu0 0.0
        %1144 = vmatprep.subr.mxu0 0.0
        %1145 = vmatpush1.msra.mxu0 0.0
        %1146 = vmatprep.subr.mxu0 0.0
        %1147 = vmatpush1.msra.mxu0 0.0
        %1148 = vmatprep.subr.mxu0 0.0
        %1149 = vmatpush1.msra.mxu0 %v1110
        %1150 = vmatprep.subr.mxu0 0.0
        %1151 = vmatpush2.msra.mxu0 0.0
        %1152 = vmatprep.subr.mxu0 0.0
        %1153 = vmatpush2.msra.mxu0 0.0
        %1154 = vmatprep.subr.mxu0 0.0
        %1155 = vmatpush2.msra.mxu0 0.0
        %1156 = vmatprep.subr.mxu0 0.0
        %1157 = vmatpush2.msra.mxu0 0.0
        %1158 = vmatprep.subr.mxu0 0.0
        %1159 = vmatpush2.msra.mxu0 0.0
        %1160 = vmatprep.subr.mxu0 0.0
        %1161 = vmatpush2.msra.mxu0 0.0
        %1162 = vmatprep.subr.mxu0 0.0
        %1163 = vmatpush2.msra.mxu0 0.0
        %1164 = vmatprep.subr.mxu0 0.0
        %1165 = vmatpush2.msra.mxu0 0.0
        %1166 = vmatprep.subr.mxu0 0.0
        %1167 = vmatpush2.msra.mxu0 0.0
        %1168 = vmatprep.subr.mxu0 0.0
        %1169 = vmatpush2.msra.mxu0 0.0
        %1170 = vmatprep.subr.mxu0 0.0
        %1171 = vmatpush2.msra.mxu0 0.0
        %1172 = vmatprep.subr.mxu0 0.0
        %1173 = vmatpush2.msra.mxu0 0.0
        %1174 = vmatprep.subr.mxu0 0.0
        %1175 = vmatpush2.msra.mxu0 0.0
        %1176 = vmatprep.subr.mxu0 0.0
        %1177 = vmatpush2.msra.mxu0 0.0
        %1178 = vmatprep.subr.mxu0 0.0
        %1179 = vmatpush2.msra.mxu0 0.0
        %1180 = vmatprep.subr.mxu0 0.0
        %1181 = vmatpush2.msra.mxu0 0.0
        %1182 = vmatprep.mubr.f32.mxu0 0.0
        %1183 = vmatmul.mubr.f32.gmra.mxu0 %v1113
        %v1184 = vpop.f32.mrf.mxu0
        %v1185 = vadd.f32 0.0, %v1184
        %v1186 = vpop.f32.mrf.mxu0
        %1187 = vmatprep.mubr.f32.mxu0 0.0
        %1188 = vmatmul.mubr.f32.gmra.mxu0 %v1116
        %v1189 = vpop.f32.mrf.mxu0
        %v1190 = vadd.f32 0.0, %v1189
        %v1191 = vpop.f32.mrf.mxu0
        %1192 = vdwg.mxu0
        %v1193 = vadd.f32 %v1099, %v1185
        %v1194 = vadd.f32 %v1104, %v1190
        %v1195 = vld [vmem:[%s2] sm:$0xff]
        %v1196 = vld [vmem:[%s2 + $0x8] sm:$0xff]
        %1198 = vset.pattern.permute.xlu0 0
        %1199 = vperm.xlu0 %1198, %v1195
        %v1200 = vpop.permute.xlu0 %1199
        %1203 = vset.pattern.permute.xlu0 0
        %1204 = vperm.xlu0 %1203, %v1196
        %v1205 = vpop.permute.xlu0 %1204
        %v1207 = vadd.f32 %v1193, %v1200
        %v1208 = vadd.f32 %v1194, %v1205
        %v1209 = vmax.f32 %v1207, 0.0
        %v1210 = vmax.f32 %v1208, 0.0
        %s1211 = scalar_lea.vmem %s218, 16 [#allocation2]
        %1212 = vst.msk [vmem:[%s1211] sm:$0xf] %vm512, %v1209
        %1213 = vst.msk [vmem:[%s1211 + $0x8] sm:$0xf0] %vm514, %v1210
        %v1216 = vrot.slane %v1209, 4
        %v1217 = vrot.slane %v1210, 4
        %v1218 = vsel %vm518, %v1216, %v1217
        %1219 = vrot.lane.b32.xlu0 %v1218, 2
        %v1220 = vpop.permute.xlu0 %1219
        %v1222 = vsel %vm525, 0.0, %v1220
        %v1223 = vsel %vm527, %v1222, 0.0
        %v1224 = vld [vmem:[%s3] sm:$0xff]
        %v1225 = vld [vmem:[%s530] sm:$0xff]
        %1227 = vrot.lane.b32.xlu0 %v1223, 127
        %v1228 = vpop.permute.xlu0 %1227
        %v1231 = vsel %vm244, %v1225, 0
        %1233 = vmatprep.subr.mxu0 0.0
        %1234 = vmatpush1.msra.mxu0 0.0
        %1235 = vmatprep.subr.mxu0 0.0
        %1236 = vmatpush1.msra.mxu0 0.0
        %1237 = vmatprep.subr.mxu0 0.0
        %1238 = vmatpush1.msra.mxu0 0.0
        %1239 = vmatprep.subr.mxu0 0.0
        %1240 = vmatpush1.msra.mxu0 0.0
        %1241 = vmatprep.subr.mxu0 0.0
        %1242 = vmatpush1.msra.mxu0 0.0
        %1243 = vmatprep.subr.mxu0 0.0
        %1244 = vmatpush1.msra.mxu0 0.0
        %1245 = vmatprep.subr.mxu0 0.0
        %1246 = vmatpush1.msra.mxu0 0.0
        %1247 = vmatprep.subr.mxu0 0.0
        %1248 = vmatpush1.msra.mxu0 0.0
        %1249 = vmatprep.subr.mxu0 0.0
        %1250 = vmatpush1.msra.mxu0 0.0
        %1251 = vmatprep.subr.mxu0 0.0
        %1252 = vmatpush1.msra.mxu0 0.0
        %1253 = vmatprep.subr.mxu0 0.0
        %1254 = vmatpush1.msra.mxu0 0.0
        %1255 = vmatprep.subr.mxu0 0.0
        %1256 = vmatpush1.msra.mxu0 0.0
        %1257 = vmatprep.subr.mxu0 0.0
        %1258 = vmatpush1.msra.mxu0 0.0
        %1259 = vmatprep.subr.mxu0 0.0
        %1260 = vmatpush1.msra.mxu0 0.0
        %1261 = vmatprep.subr.mxu0 0.0
        %1262 = vmatpush1.msra.mxu0 0.0
        %1263 = vmatprep.subr.mxu0 0.0
        %1264 = vmatpush1.msra.mxu0 %v1228
        %1265 = vmatprep.subr.mxu0 0.0
        %1266 = vmatpush2.msra.mxu0 0.0
        %1267 = vmatprep.subr.mxu0 0.0
        %1268 = vmatpush2.msra.mxu0 0.0
        %1269 = vmatprep.subr.mxu0 0.0
        %1270 = vmatpush2.msra.mxu0 0.0
        %1271 = vmatprep.subr.mxu0 0.0
        %1272 = vmatpush2.msra.mxu0 0.0
        %1273 = vmatprep.subr.mxu0 0.0
        %1274 = vmatpush2.msra.mxu0 0.0
        %1275 = vmatprep.subr.mxu0 0.0
        %1276 = vmatpush2.msra.mxu0 0.0
        %1277 = vmatprep.subr.mxu0 0.0
        %1278 = vmatpush2.msra.mxu0 0.0
        %1279 = vmatprep.subr.mxu0 0.0
        %1280 = vmatpush2.msra.mxu0 0.0
        %1281 = vmatprep.subr.mxu0 0.0
        %1282 = vmatpush2.msra.mxu0 0.0
        %1283 = vmatprep.subr.mxu0 0.0
        %1284 = vmatpush2.msra.mxu0 0.0
        %1285 = vmatprep.subr.mxu0 0.0
        %1286 = vmatpush2.msra.mxu0 0.0
        %1287 = vmatprep.subr.mxu0 0.0
        %1288 = vmatpush2.msra.mxu0 0.0
        %1289 = vmatprep.subr.mxu0 0.0
        %1290 = vmatpush2.msra.mxu0 0.0
        %1291 = vmatprep.subr.mxu0 0.0
        %1292 = vmatpush2.msra.mxu0 0.0
        %1293 = vmatprep.subr.mxu0 0.0
        %1294 = vmatpush2.msra.mxu0 0.0
        %1295 = vmatprep.subr.mxu0 0.0
        %1296 = vmatpush2.msra.mxu0 0.0
        %1297 = vmatprep.mubr.f32.mxu0 0.0
        %1298 = vmatmul.mubr.f32.gmra.mxu0 %v1231
        %v1299 = vpop.f32.mrf.mxu0
        %v1300 = vadd.f32 0.0, %v1299
        %v1301 = vpop.f32.mrf.mxu0
        %1302 = vdwg.mxu0
        %v1304 = vsel %vm244, %v1224, 0
        %1306 = vmatprep.subr.mxu0 0.0
        %1307 = vmatpush1.msra.mxu0 0.0
        %1308 = vmatprep.subr.mxu0 0.0
        %1309 = vmatpush1.msra.mxu0 0.0
        %1310 = vmatprep.subr.mxu0 0.0
        %1311 = vmatpush1.msra.mxu0 0.0
        %1312 = vmatprep.subr.mxu0 0.0
        %1313 = vmatpush1.msra.mxu0 0.0
        %1314 = vmatprep.subr.mxu0 0.0
        %1315 = vmatpush1.msra.mxu0 0.0
        %1316 = vmatprep.subr.mxu0 0.0
        %1317 = vmatpush1.msra.mxu0 0.0
        %1318 = vmatprep.subr.mxu0 0.0
        %1319 = vmatpush1.msra.mxu0 0.0
        %1320 = vmatprep.subr.mxu0 0.0
        %1321 = vmatpush1.msra.mxu0 0.0
        %1322 = vmatprep.subr.mxu0 0.0
        %1323 = vmatpush1.msra.mxu0 0.0
        %1324 = vmatprep.subr.mxu0 0.0
        %1325 = vmatpush1.msra.mxu0 0.0
        %1326 = vmatprep.subr.mxu0 0.0
        %1327 = vmatpush1.msra.mxu0 0.0
        %1328 = vmatprep.subr.mxu0 0.0
        %1329 = vmatpush1.msra.mxu0 0.0
        %1330 = vmatprep.subr.mxu0 0.0
        %1331 = vmatpush1.msra.mxu0 0.0
        %1332 = vmatprep.subr.mxu0 0.0
        %1333 = vmatpush1.msra.mxu0 0.0
        %1334 = vmatprep.subr.mxu0 0.0
        %1335 = vmatpush1.msra.mxu0 0.0
        %1336 = vmatprep.subr.mxu0 0.0
        %1337 = vmatpush1.msra.mxu0 %v1223
        %1338 = vmatprep.subr.mxu0 0.0
        %1339 = vmatpush2.msra.mxu0 0.0
        %1340 = vmatprep.subr.mxu0 0.0
        %1341 = vmatpush2.msra.mxu0 0.0
        %1342 = vmatprep.subr.mxu0 0.0
        %1343 = vmatpush2.msra.mxu0 0.0
        %1344 = vmatprep.subr.mxu0 0.0
        %1345 = vmatpush2.msra.mxu0 0.0
        %1346 = vmatprep.subr.mxu0 0.0
        %1347 = vmatpush2.msra.mxu0 0.0
        %1348 = vmatprep.subr.mxu0 0.0
        %1349 = vmatpush2.msra.mxu0 0.0
        %1350 = vmatprep.subr.mxu0 0.0
        %1351 = vmatpush2.msra.mxu0 0.0
        %1352 = vmatprep.subr.mxu0 0.0
        %1353 = vmatpush2.msra.mxu0 0.0
        %1354 = vmatprep.subr.mxu0 0.0
        %1355 = vmatpush2.msra.mxu0 0.0
        %1356 = vmatprep.subr.mxu0 0.0
        %1357 = vmatpush2.msra.mxu0 0.0
        %1358 = vmatprep.subr.mxu0 0.0
        %1359 = vmatpush2.msra.mxu0 0.0
        %1360 = vmatprep.subr.mxu0 0.0
        %1361 = vmatpush2.msra.mxu0 0.0
        %1362 = vmatprep.subr.mxu0 0.0
        %1363 = vmatpush2.msra.mxu0 0.0
        %1364 = vmatprep.subr.mxu0 0.0
        %1365 = vmatpush2.msra.mxu0 0.0
        %1366 = vmatprep.subr.mxu0 0.0
        %1367 = vmatpush2.msra.mxu0 0.0
        %1368 = vmatprep.subr.mxu0 0.0
        %1369 = vmatpush2.msra.mxu0 0.0
        %1370 = vmatprep.mubr.f32.mxu0 0.0
        %1371 = vmatmul.mubr.f32.gmra.mxu0 %v1304
        %v1372 = vpop.f32.mrf.mxu0
        %v1373 = vadd.f32 %v1300, %v1372
        %v1374 = vpop.f32.mrf.mxu0
        %1375 = vdwg.mxu0
        %v1376 = vld [vmem:[%s682] sm:$0xff]
        %1377 = vrot.lane.b32.xlu0 %v1223, 126
        %v1378 = vpop.permute.xlu0 %1377
        %v1381 = vsel %vm244, %v1376, 0
        %1383 = vmatprep.subr.mxu0 0.0
        %1384 = vmatpush1.msra.mxu0 0.0
        %1385 = vmatprep.subr.mxu0 0.0
        %1386 = vmatpush1.msra.mxu0 0.0
        %1387 = vmatprep.subr.mxu0 0.0
        %1388 = vmatpush1.msra.mxu0 0.0
        %1389 = vmatprep.subr.mxu0 0.0
        %1390 = vmatpush1.msra.mxu0 0.0
        %1391 = vmatprep.subr.mxu0 0.0
        %1392 = vmatpush1.msra.mxu0 0.0
        %1393 = vmatprep.subr.mxu0 0.0
        %1394 = vmatpush1.msra.mxu0 0.0
        %1395 = vmatprep.subr.mxu0 0.0
        %1396 = vmatpush1.msra.mxu0 0.0
        %1397 = vmatprep.subr.mxu0 0.0
        %1398 = vmatpush1.msra.mxu0 0.0
        %1399 = vmatprep.subr.mxu0 0.0
        %1400 = vmatpush1.msra.mxu0 0.0
        %1401 = vmatprep.subr.mxu0 0.0
        %1402 = vmatpush1.msra.mxu0 0.0
        %1403 = vmatprep.subr.mxu0 0.0
        %1404 = vmatpush1.msra.mxu0 0.0
        %1405 = vmatprep.subr.mxu0 0.0
        %1406 = vmatpush1.msra.mxu0 0.0
        %1407 = vmatprep.subr.mxu0 0.0
        %1408 = vmatpush1.msra.mxu0 0.0
        %1409 = vmatprep.subr.mxu0 0.0
        %1410 = vmatpush1.msra.mxu0 0.0
        %1411 = vmatprep.subr.mxu0 0.0
        %1412 = vmatpush1.msra.mxu0 0.0
        %1413 = vmatprep.subr.mxu0 0.0
        %1414 = vmatpush1.msra.mxu0 %v1378
        %1415 = vmatprep.subr.mxu0 0.0
        %1416 = vmatpush2.msra.mxu0 0.0
        %1417 = vmatprep.subr.mxu0 0.0
        %1418 = vmatpush2.msra.mxu0 0.0
        %1419 = vmatprep.subr.mxu0 0.0
        %1420 = vmatpush2.msra.mxu0 0.0
        %1421 = vmatprep.subr.mxu0 0.0
        %1422 = vmatpush2.msra.mxu0 0.0
        %1423 = vmatprep.subr.mxu0 0.0
        %1424 = vmatpush2.msra.mxu0 0.0
        %1425 = vmatprep.subr.mxu0 0.0
        %1426 = vmatpush2.msra.mxu0 0.0
        %1427 = vmatprep.subr.mxu0 0.0
        %1428 = vmatpush2.msra.mxu0 0.0
        %1429 = vmatprep.subr.mxu0 0.0
        %1430 = vmatpush2.msra.mxu0 0.0
        %1431 = vmatprep.subr.mxu0 0.0
        %1432 = vmatpush2.msra.mxu0 0.0
        %1433 = vmatprep.subr.mxu0 0.0
        %1434 = vmatpush2.msra.mxu0 0.0
        %1435 = vmatprep.subr.mxu0 0.0
        %1436 = vmatpush2.msra.mxu0 0.0
        %1437 = vmatprep.subr.mxu0 0.0
        %1438 = vmatpush2.msra.mxu0 0.0
        %1439 = vmatprep.subr.mxu0 0.0
        %1440 = vmatpush2.msra.mxu0 0.0
        %1441 = vmatprep.subr.mxu0 0.0
        %1442 = vmatpush2.msra.mxu0 0.0
        %1443 = vmatprep.subr.mxu0 0.0
        %1444 = vmatpush2.msra.mxu0 0.0
        %1445 = vmatprep.subr.mxu0 0.0
        %1446 = vmatpush2.msra.mxu0 0.0
        %1447 = vmatprep.mubr.f32.mxu0 0.0
        %1448 = vmatmul.mubr.f32.gmra.mxu0 %v1381
        %v1449 = vpop.f32.mrf.mxu0
        %v1450 = vadd.f32 0.0, %v1449
        %v1451 = vpop.f32.mrf.mxu0
        %1452 = vdwg.mxu0
        %v1453 = vadd.f32 %v1373, %v1450
        %v1454 = vld [vmem:[%s761] sm:$0xff]
        %1455 = vrot.lane.b32.xlu0 %v1223, 125
        %v1456 = vpop.permute.xlu0 %1455
        %v1459 = vsel %vm244, %v1454, 0
        %1461 = vmatprep.subr.mxu0 0.0
        %1462 = vmatpush1.msra.mxu0 0.0
        %1463 = vmatprep.subr.mxu0 0.0
        %1464 = vmatpush1.msra.mxu0 0.0
        %1465 = vmatprep.subr.mxu0 0.0
        %1466 = vmatpush1.msra.mxu0 0.0
        %1467 = vmatprep.subr.mxu0 0.0
        %1468 = vmatpush1.msra.mxu0 0.0
        %1469 = vmatprep.subr.mxu0 0.0
        %1470 = vmatpush1.msra.mxu0 0.0
        %1471 = vmatprep.subr.mxu0 0.0
        %1472 = vmatpush1.msra.mxu0 0.0
        %1473 = vmatprep.subr.mxu0 0.0
        %1474 = vmatpush1.msra.mxu0 0.0
        %1475 = vmatprep.subr.mxu0 0.0
        %1476 = vmatpush1.msra.mxu0 0.0
        %1477 = vmatprep.subr.mxu0 0.0
        %1478 = vmatpush1.msra.mxu0 0.0
        %1479 = vmatprep.subr.mxu0 0.0
        %1480 = vmatpush1.msra.mxu0 0.0
        %1481 = vmatprep.subr.mxu0 0.0
        %1482 = vmatpush1.msra.mxu0 0.0
        %1483 = vmatprep.subr.mxu0 0.0
        %1484 = vmatpush1.msra.mxu0 0.0
        %1485 = vmatprep.subr.mxu0 0.0
        %1486 = vmatpush1.msra.mxu0 0.0
        %1487 = vmatprep.subr.mxu0 0.0
        %1488 = vmatpush1.msra.mxu0 0.0
        %1489 = vmatprep.subr.mxu0 0.0
        %1490 = vmatpush1.msra.mxu0 0.0
        %1491 = vmatprep.subr.mxu0 0.0
        %1492 = vmatpush1.msra.mxu0 %v1456
        %1493 = vmatprep.subr.mxu0 0.0
        %1494 = vmatpush2.msra.mxu0 0.0
        %1495 = vmatprep.subr.mxu0 0.0
        %1496 = vmatpush2.msra.mxu0 0.0
        %1497 = vmatprep.subr.mxu0 0.0
        %1498 = vmatpush2.msra.mxu0 0.0
        %1499 = vmatprep.subr.mxu0 0.0
        %1500 = vmatpush2.msra.mxu0 0.0
        %1501 = vmatprep.subr.mxu0 0.0
        %1502 = vmatpush2.msra.mxu0 0.0
        %1503 = vmatprep.subr.mxu0 0.0
        %1504 = vmatpush2.msra.mxu0 0.0
        %1505 = vmatprep.subr.mxu0 0.0
        %1506 = vmatpush2.msra.mxu0 0.0
        %1507 = vmatprep.subr.mxu0 0.0
        %1508 = vmatpush2.msra.mxu0 0.0
        %1509 = vmatprep.subr.mxu0 0.0
        %1510 = vmatpush2.msra.mxu0 0.0
        %1511 = vmatprep.subr.mxu0 0.0
        %1512 = vmatpush2.msra.mxu0 0.0
        %1513 = vmatprep.subr.mxu0 0.0
        %1514 = vmatpush2.msra.mxu0 0.0
        %1515 = vmatprep.subr.mxu0 0.0
        %1516 = vmatpush2.msra.mxu0 0.0
        %1517 = vmatprep.subr.mxu0 0.0
        %1518 = vmatpush2.msra.mxu0 0.0
        %1519 = vmatprep.subr.mxu0 0.0
        %1520 = vmatpush2.msra.mxu0 0.0
        %1521 = vmatprep.subr.mxu0 0.0
        %1522 = vmatpush2.msra.mxu0 0.0
        %1523 = vmatprep.subr.mxu0 0.0
        %1524 = vmatpush2.msra.mxu0 0.0
        %1525 = vmatprep.mubr.f32.mxu0 0.0
        %1526 = vmatmul.mubr.f32.gmra.mxu0 %v1459
        %v1527 = vpop.f32.mrf.mxu0
        %v1528 = vadd.f32 0.0, %v1527
        %v1529 = vpop.f32.mrf.mxu0
        %1530 = vdwg.mxu0
        %v1531 = vadd.f32 %v1453, %v1528
        %v1532 = vld [vmem:[%s840] sm:$0xff]
        %1533 = vrot.lane.b32.xlu0 %v1223, 124
        %v1534 = vpop.permute.xlu0 %1533
        %v1537 = vsel %vm244, %v1532, 0
        %1539 = vmatprep.subr.mxu0 0.0
        %1540 = vmatpush1.msra.mxu0 0.0
        %1541 = vmatprep.subr.mxu0 0.0
        %1542 = vmatpush1.msra.mxu0 0.0
        %1543 = vmatprep.subr.mxu0 0.0
        %1544 = vmatpush1.msra.mxu0 0.0
        %1545 = vmatprep.subr.mxu0 0.0
        %1546 = vmatpush1.msra.mxu0 0.0
        %1547 = vmatprep.subr.mxu0 0.0
        %1548 = vmatpush1.msra.mxu0 0.0
        %1549 = vmatprep.subr.mxu0 0.0
        %1550 = vmatpush1.msra.mxu0 0.0
        %1551 = vmatprep.subr.mxu0 0.0
        %1552 = vmatpush1.msra.mxu0 0.0
        %1553 = vmatprep.subr.mxu0 0.0
        %1554 = vmatpush1.msra.mxu0 0.0
        %1555 = vmatprep.subr.mxu0 0.0
        %1556 = vmatpush1.msra.mxu0 0.0
        %1557 = vmatprep.subr.mxu0 0.0
        %1558 = vmatpush1.msra.mxu0 0.0
        %1559 = vmatprep.subr.mxu0 0.0
        %1560 = vmatpush1.msra.mxu0 0.0
        %1561 = vmatprep.subr.mxu0 0.0
        %1562 = vmatpush1.msra.mxu0 0.0
        %1563 = vmatprep.subr.mxu0 0.0
        %1564 = vmatpush1.msra.mxu0 0.0
        %1565 = vmatprep.subr.mxu0 0.0
        %1566 = vmatpush1.msra.mxu0 0.0
        %1567 = vmatprep.subr.mxu0 0.0
        %1568 = vmatpush1.msra.mxu0 0.0
        %1569 = vmatprep.subr.mxu0 0.0
        %1570 = vmatpush1.msra.mxu0 %v1534
        %1571 = vmatprep.subr.mxu0 0.0
        %1572 = vmatpush2.msra.mxu0 0.0
        %1573 = vmatprep.subr.mxu0 0.0
        %1574 = vmatpush2.msra.mxu0 0.0
        %1575 = vmatprep.subr.mxu0 0.0
        %1576 = vmatpush2.msra.mxu0 0.0
        %1577 = vmatprep.subr.mxu0 0.0
        %1578 = vmatpush2.msra.mxu0 0.0
        %1579 = vmatprep.subr.mxu0 0.0
        %1580 = vmatpush2.msra.mxu0 0.0
        %1581 = vmatprep.subr.mxu0 0.0
        %1582 = vmatpush2.msra.mxu0 0.0
        %1583 = vmatprep.subr.mxu0 0.0
        %1584 = vmatpush2.msra.mxu0 0.0
        %1585 = vmatprep.subr.mxu0 0.0
        %1586 = vmatpush2.msra.mxu0 0.0
        %1587 = vmatprep.subr.mxu0 0.0
        %1588 = vmatpush2.msra.mxu0 0.0
        %1589 = vmatprep.subr.mxu0 0.0
        %1590 = vmatpush2.msra.mxu0 0.0
        %1591 = vmatprep.subr.mxu0 0.0
        %1592 = vmatpush2.msra.mxu0 0.0
        %1593 = vmatprep.subr.mxu0 0.0
        %1594 = vmatpush2.msra.mxu0 0.0
        %1595 = vmatprep.subr.mxu0 0.0
        %1596 = vmatpush2.msra.mxu0 0.0
        %1597 = vmatprep.subr.mxu0 0.0
        %1598 = vmatpush2.msra.mxu0 0.0
        %1599 = vmatprep.subr.mxu0 0.0
        %1600 = vmatpush2.msra.mxu0 0.0
        %1601 = vmatprep.subr.mxu0 0.0
        %1602 = vmatpush2.msra.mxu0 0.0
        %1603 = vmatprep.mubr.f32.mxu0 0.0
        %1604 = vmatmul.mubr.f32.gmra.mxu0 %v1537
        %v1605 = vpop.f32.mrf.mxu0
        %v1606 = vadd.f32 0.0, %v1605
        %v1607 = vpop.f32.mrf.mxu0
        %1608 = vdwg.mxu0
        %v1609 = vadd.f32 %v1531, %v1606
        %v1610 = vld [vmem:[%s4] sm:$0xff]
        %1612 = vset.pattern.permute.xlu0 0
        %1613 = vperm.xlu0 %1612, %v1610
        %v1614 = vpop.permute.xlu0 %1613
        %v1616 = vadd.f32 %v1609, %v1614
        %v1617 = vmax.f32 %v1616, 0.0
        %1618 = vst.msk [vmem:[%s1211 + $0x4] sm:$0xff] %vm927, %v1617
        %s1619 = sand.u32 %s137, 1
        %s1620 = scalar_lea.sflag [#allocation3], %s1619
        %s1621 = sand.u32 %s137, 1
        %s1622 = smul.addr %s1621, 32
        %s1623 = scalar_lea.vmem [#allocation2], %s1622
        // Predicated region
        $region41: #{inception_forward_pallas.1} parent=39 // pred_check
          %p1624 = pneg %p147
        $region42: #{inception_forward_pallas.1} parent=39 // pred_check_branch
          %1626 = sbr.rel (%p1624) target = $region44
        $region43: #{inception_forward_pallas.1} parent=39 // pred_region
          %s1627 = smul.u32 2, %s19
          %s1629 = ssub.s32 512, 512
          %1630 = vsyncadd %s1620, %s1629
          %s1631 = smul.addr %s1627, 2
          %s1632 = smul.addr %s1631, 128
          %s1633 = scalar_lea.hbm %s5, %s1632
          %s1634 = sshll.u32 %s1623, 4
          %s1635 = int_to_ptr.vmem [resolvable:$true] %s1634
          %1640 = dma.vmem_to_hbm [thread:$0]  %s1635, 512, %s1633, %s1620, 128, 128, 8
        $region44: #{inception_forward_pallas.1} parent=39 // pred_fallthru
          _
      $region40: #{inception_forward_pallas.1} parent=5 // pred_fallthru
        _
      %p1641 = scmp.le.s32.totalorder 2, %s14
      // Predicated region
      $region45: #{inception_forward_pallas.1} parent=5 // pred_check
        %p1642 = pneg %p1641
      $region46: #{inception_forward_pallas.1} parent=5 // pred_check_branch
        %1644 = sbr.rel (%p1642) target = $region48
      $region47: #{inception_forward_pallas.1} parent=5 // pred_region
        %s1645 = ssub.s32 %s14, 2
        // Predicated region
        $region49: #{inception_forward_pallas.1} parent=47 // pred_check
          %p1646 = pneg %p153
        $region50: #{inception_forward_pallas.1} parent=47 // pred_check_branch
          %1648 = sbr.rel (%p1646) target = $region52
        $region51: #{inception_forward_pallas.1} parent=47 // pred_region
          %s1649 = sand.u32 %s138, 1
          %s1650 = scalar_lea.sflag [#allocation3], %s1649
          %s1651 = sand.u32 %s138, 1
          %s1652 = smul.addr %s1651, 32
          %s1653 = scalar_lea.vmem [#allocation2], %s1652
          %1654 = dma.done %s1650, 512
        $region52: #{inception_forward_pallas.1} parent=47 // pred_fallthru
          _
      $region48: #{inception_forward_pallas.1} parent=5 // pred_fallthru
        _
    $region6: #{inception_forward_pallas.1} parent=1 // loop_footer
      %s18 = sadd.s32 1, %s14
    $region7: #{inception_forward_pallas.1} parent=1 // loop_footer_branch
      %13 = sbr.rel target = $region3
    $region8: #{inception_forward_pallas.1} parent=1 // loop_exit
      _
    %1655 = vsyncpa [#allocation3], 1
    %s1656 = scalar_lea.sflag [#allocation3], 1
    %1657 = vsyncpa %s1656, 1

</llo_original>
